<compile_context>
chip_gen: v7x
topology: tpu7x:2x2x1
jax: 0.10.0
libtpu: 0.0.40
codegen_flags: <defaults>
</compile_context>

<pallas_src>
import jax
import jax.numpy as jnp
from jax import lax
from jax.experimental import pallas as pl
from jax.experimental.pallas import tpu as pltpu

EPS = 1e-5
NEG_SLOPE = 0.1


def _lrelu(v):
    return jnp.where(v >= 0, v, NEG_SLOPE * v)


def _vmem_limit_bytes():
    """Hardware-aware VMEM budget: ~3/4 of physical, capped at 100 MiB.

    -> ~96 MiB on v5e/v6e (128 MiB physical), ~48 MiB on v7x (64 MiB physical).
    """
    try:
        cap = int(getattr(pltpu.get_tpu_info(), "vmem_capacity_bytes", 0))
    except Exception:
        cap = 0
    if cap <= 0:
        cap = 64 * 1024 * 1024            # conservative fallback (v7x physical)
    return min((cap * 3) // 4, 100 * 1024 * 1024)


def _probe_roll_sign():
    """Test-harness-only check of pltpu.roll's lane-rotation convention.

    Returns s such that pltpu.roll(x, (s*d) % n, axis=1)[:, i] == x[:, i + d].
    Production callers never run this: the sign is pinned to the jnp.roll
    convention (-1) and passed explicitly, keeping tracing/AOT free of eager
    device calls.
    """
    def probe(x_ref, o_ref):
        o_ref[...] = pltpu.roll(x_ref[...], 1, axis=1)

    x = lax.broadcasted_iota(jnp.int32, (8, 128), 1)
    y = pl.pallas_call(
        probe,
        out_shape=jax.ShapeDtypeStruct((8, 128), jnp.int32),
        in_specs=[pl.BlockSpec(memory_space=pltpu.MemorySpace.VMEM)],
        out_specs=pl.BlockSpec(memory_space=pltpu.MemorySpace.VMEM),
    )(x)
    # jnp.roll convention: y[:, i] = x[:, i - shift]  ->  y[0, 1] == 0
    return -1 if int(y[0, 1]) == 0 else 1


def _make_kernel(*, n, h, w, c_pad, r_pad, mxu_dtype, roll_sign):
    """Build the fused BasicBlock kernel for an (n, h, w) batch."""
    hp, wp = h + 2, w + 2
    img_area = hp * wp
    # Tap k = 3*dy + dx reads the pixel at flattened-raster offset
    # (dy-1)*wp + (dx-1) relative to the output pixel; centre tap excluded
    # (it is contracted directly against the resident slab).
    taps_nc = [(dy - 1) * wp + (dx - 1)
               for dy in range(3) for dx in range(3) if (dy, dx) != (1, 1)]
    inv_m = 1.0 / float(n * h * w)        # BN normalizer over valid pixels

    def kernel(a_ref, w8a_ref, wca_ref, g1_ref, b1_ref,
               w8b_ref, wcb_ref, g2_ref, b2_ref, out_ref, col_ref):
        a = a_ref[...]                                   # (C_pad, R_pad) f32

        # Validity mask (1.0 on interior pixels of real images, 0.0 on halo /
        # lane-tail) from index arithmetic -- no HBM input.  The div/mod is
        # done in f32 floor arithmetic, exact for any raster size that passes
        # the VMEM guard (indices << 2^24).
        r_idx = lax.broadcasted_iota(jnp.int32, (1, r_pad), 1).astype(jnp.float32)
        rem = r_idx - float(img_area) * jnp.floor(r_idx / float(img_area))
        py = jnp.floor(rem / float(wp))
        px = rem - float(wp) * py
        valid = ((r_idx < float(n * img_area))
                 & (py >= 1.0) & (py <= float(h))
                 & (px >= 1.0) & (px <= float(w)))
        mask = jnp.where(valid, 1.0, 0.0).astype(jnp.float32)    # (1, R_pad)

        def conv3x3_bn(src, w8_ref, wc_ref, g_ref, b_ref):
            # im2col for the 8 off-centre taps: one XLU lane-roll each, cast
            # to the MXU dtype at the (tile-aligned) store into the shared
            # scratch.  Rolls stay in f32 (known-good rotate lowering); the
            # cast is cheap VPU work and the *stored* bytes -- which bind the
            # vst slot -- are already halved for bf16.
            src_mm = src.astype(mxu_dtype)
            for j, d in enumerate(taps_nc):
                shifted = pltpu.roll(src, (roll_sign * d) % r_pad, axis=1)
                col_ref[j * c_pad:(j + 1) * c_pad, :] = shifted.astype(mxu_dtype)
            # One K = 8*C_pad MXU matmul + one small K = C_pad matmul for the
            # centre tap (data already resident; no copy).  f32 accumulation.
            conv = (jnp.dot(w8_ref[...], col_ref[...],
                            preferred_element_type=jnp.float32)
                    + jnp.dot(wc_ref[...], src_mm,
                              preferred_element_type=jnp.float32))  # (C_pad, R_pad) f32
            # Training-mode BatchNorm over the N*H*W valid pixels, centred
            # variance (no E[x^2]-mean^2 cancellation; var >= 0).  Halo/tail
            # garbage in `conv` is finite and masked out of the statistics.
            mean = jnp.sum(conv * mask, axis=1, keepdims=True) * inv_m
            cen = (conv - mean) * mask                  # exact 0 on halo/tail
            var = jnp.sum(cen * cen, axis=1, keepdims=True) * inv_m
            scale = lax.rsqrt(var + EPS) * g_ref[...]
            return cen * scale + b_ref[...]

        h1 = conv3x3_bn(a, w8a_ref, wca_ref, g1_ref, b1_ref)
        # lrelu + halo re-zeroing: the mask IS conv2's zero padding
        # (no padded intermediate tensor, nothing to memset).
        h1 = mask * _lrelu(h1)
        h2 = conv3x3_bn(h1, w8b_ref, wcb_ref, g2_ref, b2_ref)
        # identity residual (downsample=None) + final lrelu fused into store.
        out_ref[...] = _lrelu(h2 + a)

    return kernel


def basic_block(x, w1, g1, b1, w2, g2, b2, *,
                mxu_dtype=jnp.bfloat16, roll_sign=-1):
    """x: (N, Cin, H, W) NCHW; conv weights in PyTorch layout (Cout, Cin, 3, 3).

    mxu_dtype: dtype of the matmul operands (im2col scratch + weights).
      bf16 (default) = native MXU mode on v5e/v6e/v7x, f32 accumulation;
      float32 reproduces exact f32 matmul numerics.
    roll_sign: pltpu.roll convention; -1 == jnp.roll semantics (default).
    """
    n, cin, h, w = x.shape
    cout = w1.shape[0]
    assert cin == cout, "BasicBlock with downsample=None requires inplanes == planes"
    hp, wp = h + 2, w + 2
    r = n * hp * wp
    r_pad = ((r + 127) // 128) * 128      # lane-align the flattened raster axis

    mxu_itemsize = jnp.zeros((), mxu_dtype).dtype.itemsize
    sub_tile = 8 * (4 // mxu_itemsize)    # sublane tile rows for the MXU dtype
    c_pad = ((cout + sub_tile - 1) // sub_tile) * sub_tile

    # Static im2col invariant: every valid pixel's 3x3 taps stay inside
    # [0, n*hp*wp), so circular-roll wraparound only ever touches halo/tail
    # lanes (which downstream masking / the output slice discard).
    min_valid_r = wp + 1
    max_valid_r = (n - 1) * hp * wp + h * wp + w
    assert min_valid_r - (wp + 1) >= 0
    assert max_valid_r + (wp + 1) < n * hp * wp <= r_pad

    # VMEM budget guard: input+output slabs (f32), 8-tap col scratch (MXU
    # dtype), ~4 slab-sized f32 temporaries.
    vmem_limit = _vmem_limit_bytes()
    working_set = c_pad * r_pad * (4 + 4 + 8 * mxu_itemsize + 4 * 4)
    if working_set > vmem_limit:
        # TODO(synk): implement the tiled multi-pass (two-pass BN) path described
        # in the module header for shapes whose working set exceeds VMEM.
        raise NotImplementedError(
            f"BasicBlock working set ~{working_set >> 20} MiB exceeds the VMEM "
            f"budget of {vmem_limit >> 20} MiB; requires the tiled multi-pass "
            "path (see TODO(synk) in the module header).")

    f32 = jnp.float32
    # glue: NCHW -> (C_pad, R_pad): channels on sublanes, zero-padded raster
    # (per-image halo + lane tail) on lanes.
    xpad = jnp.pad(x.astype(f32), ((0, 0), (0, 0), (1, 1), (1, 1)))
    a = jnp.transpose(xpad, (1, 0, 2, 3)).reshape(cin, r)
    a = jnp.pad(a, ((0, c_pad - cin), (0, r_pad - r)))

    # weights: (Cout, Cin, 3, 3) -> zero-pad channels -> tap-major (k=3*dy+dx),
    # cin-minor; split the centre tap (k=4) from the 8 off-centre taps.
    def prep_w(wt):
        wtp = jnp.pad(wt.astype(f32),
                      ((0, c_pad - wt.shape[0]), (0, c_pad - wt.shape[1]),
                       (0, 0), (0, 0)))
        wk = jnp.transpose(wtp, (0, 2, 3, 1)).reshape(c_pad, 9, c_pad)
        w_centre = wk[:, 4, :]
        w_8 = jnp.concatenate([wk[:, :4, :], wk[:, 5:, :]], axis=1)
        return (w_8.reshape(c_pad, 8 * c_pad).astype(mxu_dtype),
                w_centre.astype(mxu_dtype))

    w8_1, wc_1 = prep_w(w1)
    w8_2, wc_2 = prep_w(w2)

    def prep_bn(v):
        return jnp.pad(v.astype(f32).reshape(-1, 1),
                       ((0, c_pad - v.shape[0]), (0, 0)))

    g1c, b1c, g2c, b2c = prep_bn(g1), prep_bn(b1), prep_bn(g2), prep_bn(b2)

    vmem = pl.BlockSpec(memory_space=pltpu.MemorySpace.VMEM)
    out_t = pl.pallas_call(
        _make_kernel(n=n, h=h, w=w, c_pad=c_pad, r_pad=r_pad,
                     mxu_dtype=mxu_dtype, roll_sign=roll_sign),
        out_shape=jax.ShapeDtypeStruct((c_pad, r_pad), f32),
        in_specs=[vmem] * 9,
        out_specs=vmem,
        scratch_shapes=[pltpu.VMEM((8 * c_pad, r_pad), mxu_dtype)],  # shared im2col
        compiler_params=pltpu.CompilerParams(vmem_limit_bytes=vmem_limit),
    )(a, w8_1, wc_1, g1c, b1c, w8_2, wc_2, g2c, b2c)

    # glue: (C_pad, padded raster) -> NCHW interior.
    out = out_t[:cout, :r].reshape(cout, n, hp, wp)[:, :, 1:h + 1, 1:w + 1]
    return jnp.transpose(out, (1, 0, 2, 3))


def _reference(x, w1, g1, b1, w2, g2, b2, conv_operand_dtype=None):
    """Pure-JAX reference matching the PyTorch forward (training-mode BN).

    conv_operand_dtype=jnp.bfloat16 models the kernel's default MXU mode
    exactly: conv inputs/weights rounded to bf16, accumulation in f32, all
    BN / LeakyReLU math in f32.
    """
    def q(t):
        if conv_operand_dtype is None:
            return t
        return t.astype(conv_operand_dtype).astype(jnp.float32)

    def conv(v, wt):
        return lax.conv_general_dilated(
            q(v), q(wt), window_strides=(1, 1), padding=((1, 1), (1, 1)),
            dimension_numbers=("NCHW", "OIHW", "NCHW"),
            precision=lax.Precision.HIGHEST)

    def bn(v, g, b):
        mean = jnp.mean(v, axis=(0, 2, 3), keepdims=True)
        var = jnp.mean((v - mean) ** 2, axis=(0, 2, 3), keepdims=True)
        return (v - mean) * lax.rsqrt(var + EPS) * g.reshape(1, -1, 1, 1) \
            + b.reshape(1, -1, 1, 1)

    out = _lrelu(bn(conv(x, w1), g1, b1))
    out = bn(conv(out, w2), g2, b2)
    return _lrelu(out + x)


if __name__ == "__main__":
    # Shapes consistent with BasicBlock(inplanes=4, planes=4, stride=1).
    n, c, h, w = 2, 4, 16, 16
    key = jax.random.PRNGKey(0)
    kx, k1, k2, kg1, kb1, kg2, kb2 = jax.random.split(key, 7)

    x = jax.random.normal(kx, (n, c, h, w), jnp.float32)
    w1 = jax.random.normal(k1, (c, c, 3, 3), jnp.float32) * 0.2
    w2 = jax.random.normal(k2, (c, c, 3, 3), jnp.float32) * 0.2
    g1 = 1.0 + 0.1 * jax.random.normal(kg1, (c,), jnp.float32)
    b1 = 0.1 * jax.random.normal(kb1, (c,), jnp.float32)
    g2 = 1.0 + 0.1 * jax.random.normal(kg2, (c,), jnp.float32)
    b2 = 0.1 * jax.random.normal(kb2, (c,), jnp.float32)

    # Test-only sanity probe of the roll convention (kept out of the trace
    # path; production callers rely on the pinned jnp.roll sign).
    try:
        roll_sign = _probe_roll_sign()
    except Exception:
        roll_sign = -1

    ref_f32 = _reference(x, w1, g1, b1, w2, g2, b2)

    # 1) exact-f32 MXU path: matches the PyTorch float32 forward.
    out_f32 = jax.block_until_ready(
        basic_block(x, w1, g1, b1, w2, g2, b2,
                    mxu_dtype=jnp.float32, roll_sign=roll_sign))
    assert out_f32.shape == (n, c, h, w)
    err_f32 = float(jnp.max(jnp.abs(out_f32 - ref_f32)))
    assert err_f32 < 2e-3, f"f32-MXU path mismatch: max abs err = {err_f32}"

    # 2) default bf16-MXU path (native MXU mode on v5e/v6e/v7x): tight check
    #    against a reference with identically bf16-rounded conv operands,
    #    loose check against the pure-f32 reference (bf16 quantization bound).
    out_bf16 = jax.block_until_ready(
        basic_block(x, w1, g1, b1, w2, g2, b2, roll_sign=roll_sign))
    ref_bf16 = _reference(x, w1, g1, b1, w2, g2, b2,
                          conv_operand_dtype=jnp.bfloat16)
    err_tight = float(jnp.max(jnp.abs(out_bf16 - ref_bf16)))
    err_loose = float(jnp.max(jnp.abs(out_bf16 - ref_f32)))
    assert err_tight < 2e-3, f"bf16-MXU path mismatch: max abs err = {err_tight}"
    assert err_loose < 1e-1, \
        f"bf16-MXU path too far from the f32 reference: {err_loose}"

    print("KERNEL_OK")
</pallas_src>

<mosaic_0001>
module attributes {stable_mosaic.version = 11 : i64} {
  func.func @probe(%arg0: memref<8x128xi32, #tpu.memory_space<vmem>>, %arg1: memref<8x128xi32, #tpu.memory_space<vmem>>) attributes {dimension_semantics = [], scalar_prefetch = 0 : i64, scratch_operands = 0 : i64, tpu.core_type = #tpu.core_type<tc>} {
    %c0 = arith.constant 0 : index
    %c0_0 = arith.constant 0 : index
    %0 = vector.load %arg0[%c0, %c0_0] : memref<8x128xi32, #tpu.memory_space<vmem>>, vector<8x128xi32>
    %c1_i32 = arith.constant 1 : i32
    %1 = tpu.dynamic_rotate %0 by %c1_i32 dim 1 : vector<8x128xi32>, i32 -> vector<8x128xi32>
    %c0_1 = arith.constant 0 : index
    %c0_2 = arith.constant 0 : index
    %2 = vector.load %arg1[%c0_1, %c0_2] : memref<8x128xi32, #tpu.memory_space<vmem>>, vector<8x128xi32>
    tpu.vector_store %arg1[%c0_1, %c0_2], %1 {strides = array<i32>} : memref<8x128xi32, #tpu.memory_space<vmem>>, vector<8x128xi32>,
    return
  }
}

module attributes {stable_mosaic.version = 11 : i64} {
  func.func @kernel(%arg0: memref<8x768xf32, #tpu.memory_space<vmem>>, %arg1: memref<8x64xf32, #tpu.memory_space<vmem>>, %arg2: memref<8x8xf32, #tpu.memory_space<vmem>>, %arg3: memref<8x1xf32, #tpu.memory_space<vmem>>, %arg4: memref<8x1xf32, #tpu.memory_space<vmem>>, %arg5: memref<8x64xf32, #tpu.memory_space<vmem>>, %arg6: memref<8x8xf32, #tpu.memory_space<vmem>>, %arg7: memref<8x1xf32, #tpu.memory_space<vmem>>, %arg8: memref<8x1xf32, #tpu.memory_space<vmem>>, %arg9: memref<8x768xf32, #tpu.memory_space<vmem>>, %arg10: memref<64x768xf32, #tpu.memory_space<vmem>>) attributes {dimension_semantics = [], scalar_prefetch = 0 : i64, scratch_operands = 1 : i64, tpu.core_type = #tpu.core_type<tc>} {
    %c0 = arith.constant 0 : index
    %c0_0 = arith.constant 0 : index
    %0 = vector.load %arg0[%c0, %c0_0] : memref<8x768xf32, #tpu.memory_space<vmem>>, vector<8x768xf32>
    %1 = tpu.iota {dimensions = array<i32: 1>} : vector<1x768xi32>
    %2 = arith.sitofp %1 : vector<1x768xi32> to vector<1x768xf32>
    %cst = arith.constant 3.240000e+02 : f32
    %3 = vector.broadcast %cst : f32 to vector<1x768xf32>
    %4 = arith.divf %2, %3 : vector<1x768xf32>
    %5 = math.floor %4 : vector<1x768xf32>
    %cst_1 = arith.constant 3.240000e+02 : f32
    %6 = vector.broadcast %cst_1 : f32 to vector<1x768xf32>
    %7 = arith.mulf %6, %5 : vector<1x768xf32>
    %8 = arith.subf %2, %7 : vector<1x768xf32>
    %cst_2 = arith.constant 1.800000e+01 : f32
    %9 = vector.broadcast %cst_2 : f32 to vector<1x768xf32>
    %10 = arith.divf %8, %9 : vector<1x768xf32>
    %11 = math.floor %10 : vector<1x768xf32>
    %cst_3 = arith.constant 1.800000e+01 : f32
    %12 = vector.broadcast %cst_3 : f32 to vector<1x768xf32>
    %13 = arith.mulf %12, %11 : vector<1x768xf32>
    %14 = arith.subf %8, %13 : vector<1x768xf32>
    %cst_4 = arith.constant 6.480000e+02 : f32
    %15 = vector.broadcast %cst_4 : f32 to vector<1x768xf32>
    %16 = arith.cmpf olt, %2, %15 : vector<1x768xf32>
    %cst_5 = arith.constant 1.000000e+00 : f32
    %17 = vector.broadcast %cst_5 : f32 to vector<1x768xf32>
    %18 = arith.cmpf oge, %11, %17 : vector<1x768xf32>
    %19 = arith.andi %16, %18 : vector<1x768xi1>
    %cst_6 = arith.constant 1.600000e+01 : f32
    %20 = vector.broadcast %cst_6 : f32 to vector<1x768xf32>
    %21 = arith.cmpf ole, %11, %20 : vector<1x768xf32>
    %22 = arith.andi %19, %21 : vector<1x768xi1>
    %cst_7 = arith.constant 1.000000e+00 : f32
    %23 = vector.broadcast %cst_7 : f32 to vector<1x768xf32>
    %24 = arith.cmpf oge, %14, %23 : vector<1x768xf32>
    %25 = arith.andi %22, %24 : vector<1x768xi1>
    %cst_8 = arith.constant 1.600000e+01 : f32
    %26 = vector.broadcast %cst_8 : f32 to vector<1x768xf32>
    %27 = arith.cmpf ole, %14, %26 : vector<1x768xf32>
    %28 = arith.andi %25, %27 : vector<1x768xi1>
    %cst_9 = arith.constant 1.000000e+00 : f32
    %cst_10 = arith.constant 0.000000e+00 : f32
    %29 = vector.broadcast %cst_9 : f32 to vector<1x768xf32>
    %30 = vector.broadcast %cst_10 : f32 to vector<1x768xf32>
    %31 = arith.select %28, %29, %30 : vector<1x768xi1>, vector<1x768xf32>
    %c19_i32 = arith.constant 19 : i32
    %32 = tpu.dynamic_rotate %0 by %c19_i32 dim 1 : vector<8x768xf32>, i32 -> vector<8x768xf32>
    %c0_11 = arith.constant 0 : index
    %c0_12 = arith.constant 0 : index
    %33 = vector.load %arg10[%c0_11, %c0_12] : memref<64x768xf32, #tpu.memory_space<vmem>>, vector<8x768xf32>
    tpu.vector_store %arg10[%c0_11, %c0_12], %32 {strides = array<i32>} : memref<64x768xf32, #tpu.memory_space<vmem>>, vector<8x768xf32>,
    %c18_i32 = arith.constant 18 : i32
    %34 = tpu.dynamic_rotate %0 by %c18_i32 dim 1 : vector<8x768xf32>, i32 -> vector<8x768xf32>
    %c8 = arith.constant 8 : index
    %c0_13 = arith.constant 0 : index
    %35 = vector.load %arg10[%c8, %c0_13] : memref<64x768xf32, #tpu.memory_space<vmem>>, vector<8x768xf32>
    tpu.vector_store %arg10[%c8, %c0_13], %34 {strides = array<i32>} : memref<64x768xf32, #tpu.memory_space<vmem>>, vector<8x768xf32>,
    %c17_i32 = arith.constant 17 : i32
    %36 = tpu.dynamic_rotate %0 by %c17_i32 dim 1 : vector<8x768xf32>, i32 -> vector<8x768xf32>
    %c16 = arith.constant 16 : index
    %c0_14 = arith.constant 0 : index
    %37 = vector.load %arg10[%c16, %c0_14] : memref<64x768xf32, #tpu.memory_space<vmem>>, vector<8x768xf32>
    tpu.vector_store %arg10[%c16, %c0_14], %36 {strides = array<i32>} : memref<64x768xf32, #tpu.memory_space<vmem>>, vector<8x768xf32>,
    %c1_i32 = arith.constant 1 : i32
    %38 = tpu.dynamic_rotate %0 by %c1_i32 dim 1 : vector<8x768xf32>, i32 -> vector<8x768xf32>
    %c24 = arith.constant 24 : index
    %c0_15 = arith.constant 0 : index
    %39 = vector.load %arg10[%c24, %c0_15] : memref<64x768xf32, #tpu.memory_space<vmem>>, vector<8x768xf32>
    tpu.vector_store %arg10[%c24, %c0_15], %38 {strides = array<i32>} : memref<64x768xf32, #tpu.memory_space<vmem>>, vector<8x768xf32>,
    %c767_i32 = arith.constant 767 : i32
    %40 = tpu.dynamic_rotate %0 by %c767_i32 dim 1 : vector<8x768xf32>, i32 -> vector<8x768xf32>
    %c32 = arith.constant 32 : index
    %c0_16 = arith.constant 0 : index
    %41 = vector.load %arg10[%c32, %c0_16] : memref<64x768xf32, #tpu.memory_space<vmem>>, vector<8x768xf32>
    tpu.vector_store %arg10[%c32, %c0_16], %40 {strides = array<i32>} : memref<64x768xf32, #tpu.memory_space<vmem>>, vector<8x768xf32>,
    %c751_i32 = arith.constant 751 : i32
    %42 = tpu.dynamic_rotate %0 by %c751_i32 dim 1 : vector<8x768xf32>, i32 -> vector<8x768xf32>
    %c40 = arith.constant 40 : index
    %c0_17 = arith.constant 0 : index
    %43 = vector.load %arg10[%c40, %c0_17] : memref<64x768xf32, #tpu.memory_space<vmem>>, vector<8x768xf32>
    tpu.vector_store %arg10[%c40, %c0_17], %42 {strides = array<i32>} : memref<64x768xf32, #tpu.memory_space<vmem>>, vector<8x768xf32>,
    %c750_i32 = arith.constant 750 : i32
    %44 = tpu.dynamic_rotate %0 by %c750_i32 dim 1 : vector<8x768xf32>, i32 -> vector<8x768xf32>
    %c48 = arith.constant 48 : index
    %c0_18 = arith.constant 0 : index
    %45 = vector.load %arg10[%c48, %c0_18] : memref<64x768xf32, #tpu.memory_space<vmem>>, vector<8x768xf32>
    tpu.vector_store %arg10[%c48, %c0_18], %44 {strides = array<i32>} : memref<64x768xf32, #tpu.memory_space<vmem>>, vector<8x768xf32>,
    %c749_i32 = arith.constant 749 : i32
    %46 = tpu.dynamic_rotate %0 by %c749_i32 dim 1 : vector<8x768xf32>, i32 -> vector<8x768xf32>
    %c56 = arith.constant 56 : index
    %c0_19 = arith.constant 0 : index
    %47 = vector.load %arg10[%c56, %c0_19] : memref<64x768xf32, #tpu.memory_space<vmem>>, vector<8x768xf32>
    tpu.vector_store %arg10[%c56, %c0_19], %46 {strides = array<i32>} : memref<64x768xf32, #tpu.memory_space<vmem>>, vector<8x768xf32>,
    %c0_20 = arith.constant 0 : index
    %c0_21 = arith.constant 0 : index
    %48 = vector.load %arg1[%c0_20, %c0_21] : memref<8x64xf32, #tpu.memory_space<vmem>>, vector<8x64xf32>
    %c0_22 = arith.constant 0 : index
    %c0_23 = arith.constant 0 : index
    %49 = vector.load %arg10[%c0_22, %c0_23] : memref<64x768xf32, #tpu.memory_space<vmem>>, vector<64x768xf32>
    %cst_24 = arith.constant dense<0.000000e+00> : vector<8x768xf32>
    %50 = tpu.matmul %48, %49, %cst_24 {dimension_numbers = #tpu.dot_dimension_numbers<[1], [0], [0], [1], [0, 0, 1, 1], [], []>} : vector<8x64xf32>, vector<64x768xf32>, vector<8x768xf32> -> vector<8x768xf32>
    %c0_25 = arith.constant 0 : index
    %c0_26 = arith.constant 0 : index
    %51 = vector.load %arg2[%c0_25, %c0_26] : memref<8x8xf32, #tpu.memory_space<vmem>>, vector<8x8xf32>
    %cst_27 = arith.constant dense<0.000000e+00> : vector<8x768xf32>
    %52 = tpu.matmul %51, %0, %cst_27 {dimension_numbers = #tpu.dot_dimension_numbers<[1], [0], [0], [1], [0, 0, 1, 1], [], []>} : vector<8x8xf32>, vector<8x768xf32>, vector<8x768xf32> -> vector<8x768xf32>
    %53 = arith.addf %50, %52 : vector<8x768xf32>
    %54 = vector.broadcast %31 : vector<1x768xf32> to vector<8x768xf32>
    %55 = arith.mulf %53, %54 : vector<8x768xf32>
    %cst_28 = arith.constant dense<0.000000e+00> : vector<8xf32>
    %56 = vector.multi_reduction <add>, %55, %cst_28 [1] : vector<8x768xf32> to vector<8xf32>
    %57 = vector.shape_cast %56 : vector<8xf32> to vector<8x1xf32>
    %cst_29 = arith.constant 0.001953125 : f32
    %58 = vector.broadcast %cst_29 : f32 to vector<8x1xf32>
    %59 = arith.mulf %57, %58 : vector<8x1xf32>
    %60 = vector.broadcast %59 : vector<8x1xf32> to vector<8x768xf32>
    %61 = arith.subf %53, %60 : vector<8x768xf32>
    %62 = vector.broadcast %31 : vector<1x768xf32> to vector<8x768xf32>
    %63 = arith.mulf %61, %62 : vector<8x768xf32>
    %64 = arith.mulf %63, %63 : vector<8x768xf32>
    %cst_30 = arith.constant dense<0.000000e+00> : vector<8xf32>
    %65 = vector.multi_reduction <add>, %64, %cst_30 [1] : vector<8x768xf32> to vector<8xf32>
    %66 = vector.shape_cast %65 : vector<8xf32> to vector<8x1xf32>
    %cst_31 = arith.constant 0.001953125 : f32
    %67 = vector.broadcast %cst_31 : f32 to vector<8x1xf32>
    %68 = arith.mulf %66, %67 : vector<8x1xf32>
    %cst_32 = arith.constant 9.99999974E-6 : f32
    %69 = vector.broadcast %cst_32 : f32 to vector<8x1xf32>
    %70 = arith.addf %68, %69 : vector<8x1xf32>
    %71 = math.rsqrt %70 : vector<8x1xf32>
    %c0_33 = arith.constant 0 : index
    %c0_34 = arith.constant 0 : index
    %72 = vector.load %arg3[%c0_33, %c0_34] : memref<8x1xf32, #tpu.memory_space<vmem>>, vector<8x1xf32>
    %73 = arith.mulf %71, %72 : vector<8x1xf32>
    %74 = vector.broadcast %73 : vector<8x1xf32> to vector<8x768xf32>
    %75 = arith.mulf %63, %74 : vector<8x768xf32>
    %c0_35 = arith.constant 0 : index
    %c0_36 = arith.constant 0 : index
    %76 = vector.load %arg4[%c0_35, %c0_36] : memref<8x1xf32, #tpu.memory_space<vmem>>, vector<8x1xf32>
    %77 = vector.broadcast %76 : vector<8x1xf32> to vector<8x768xf32>
    %78 = arith.addf %75, %77 : vector<8x768xf32>
    %cst_37 = arith.constant 0.000000e+00 : f32
    %79 = vector.broadcast %cst_37 : f32 to vector<8x768xf32>
    %80 = arith.cmpf oge, %78, %79 : vector<8x768xf32>
    %cst_38 = arith.constant 1.000000e-01 : f32
    %81 = vector.broadcast %cst_38 : f32 to vector<8x768xf32>
    %82 = arith.mulf %81, %78 : vector<8x768xf32>
    %83 = arith.select %80, %78, %82 : vector<8x768xi1>, vector<8x768xf32>
    %84 = vector.broadcast %31 : vector<1x768xf32> to vector<8x768xf32>
    %85 = arith.mulf %84, %83 : vector<8x768xf32>
    %c19_i32_39 = arith.constant 19 : i32
    %86 = tpu.dynamic_rotate %85 by %c19_i32_39 dim 1 : vector<8x768xf32>, i32 -> vector<8x768xf32>
    %c0_40 = arith.constant 0 : index
    %c0_41 = arith.constant 0 : index
    %87 = vector.load %arg10[%c0_40, %c0_41] : memref<64x768xf32, #tpu.memory_space<vmem>>, vector<8x768xf32>
    tpu.vector_store %arg10[%c0_40, %c0_41], %86 {strides = array<i32>} : memref<64x768xf32, #tpu.memory_space<vmem>>, vector<8x768xf32>,
    %c18_i32_42 = arith.constant 18 : i32
    %88 = tpu.dynamic_rotate %85 by %c18_i32_42 dim 1 : vector<8x768xf32>, i32 -> vector<8x768xf32>
    %c8_43 = arith.constant 8 : index
    %c0_44 = arith.constant 0 : index
    %89 = vector.load %arg10[%c8_43, %c0_44] : memref<64x768xf32, #tpu.memory_space<vmem>>, vector<8x768xf32>
    tpu.vector_store %arg10[%c8_43, %c0_44], %88 {strides = array<i32>} : memref<64x768xf32, #tpu.memory_space<vmem>>, vector<8x768xf32>,
    %c17_i32_45 = arith.constant 17 : i32
    %90 = tpu.dynamic_rotate %85 by %c17_i32_45 dim 1 : vector<8x768xf32>, i32 -> vector<8x768xf32>
    %c16_46 = arith.constant 16 : index
    %c0_47 = arith.constant 0 : index
    %91 = vector.load %arg10[%c16_46, %c0_47] : memref<64x768xf32, #tpu.memory_space<vmem>>, vector<8x768xf32>
    tpu.vector_store %arg10[%c16_46, %c0_47], %90 {strides = array<i32>} : memref<64x768xf32, #tpu.memory_space<vmem>>, vector<8x768xf32>,
    %c1_i32_48 = arith.constant 1 : i32
    %92 = tpu.dynamic_rotate %85 by %c1_i32_48 dim 1 : vector<8x768xf32>, i32 -> vector<8x768xf32>
    %c24_49 = arith.constant 24 : index
    %c0_50 = arith.constant 0 : index
    %93 = vector.load %arg10[%c24_49, %c0_50] : memref<64x768xf32, #tpu.memory_space<vmem>>, vector<8x768xf32>
    tpu.vector_store %arg10[%c24_49, %c0_50], %92 {strides = array<i32>} : memref<64x768xf32, #tpu.memory_space<vmem>>, vector<8x768xf32>,
    %c767_i32_51 = arith.constant 767 : i32
    %94 = tpu.dynamic_rotate %85 by %c767_i32_51 dim 1 : vector<8x768xf32>, i32 -> vector<8x768xf32>
    %c32_52 = arith.constant 32 : index
    %c0_53 = arith.constant 0 : index
    %95 = vector.load %arg10[%c32_52, %c0_53] : memref<64x768xf32, #tpu.memory_space<vmem>>, vector<8x768xf32>
    tpu.vector_store %arg10[%c32_52, %c0_53], %94 {strides = array<i32>} : memref<64x768xf32, #tpu.memory_space<vmem>>, vector<8x768xf32>,
    %c751_i32_54 = arith.constant 751 : i32
    %96 = tpu.dynamic_rotate %85 by %c751_i32_54 dim 1 : vector<8x768xf32>, i32 -> vector<8x768xf32>
    %c40_55 = arith.constant 40 : index
    %c0_56 = arith.constant 0 : index
    %97 = vector.load %arg10[%c40_55, %c0_56] : memref<64x768xf32, #tpu.memory_space<vmem>>, vector<8x768xf32>
    tpu.vector_store %arg10[%c40_55, %c0_56], %96 {strides = array<i32>} : memref<64x768xf32, #tpu.memory_space<vmem>>, vector<8x768xf32>,
    %c750_i32_57 = arith.constant 750 : i32
    %98 = tpu.dynamic_rotate %85 by %c750_i32_57 dim 1 : vector<8x768xf32>, i32 -> vector<8x768xf32>
    %c48_58 = arith.constant 48 : index
    %c0_59 = arith.constant 0 : index
    %99 = vector.load %arg10[%c48_58, %c0_59] : memref<64x768xf32, #tpu.memory_space<vmem>>, vector<8x768xf32>
    tpu.vector_store %arg10[%c48_58, %c0_59], %98 {strides = array<i32>} : memref<64x768xf32, #tpu.memory_space<vmem>>, vector<8x768xf32>,
    %c749_i32_60 = arith.constant 749 : i32
    %100 = tpu.dynamic_rotate %85 by %c749_i32_60 dim 1 : vector<8x768xf32>, i32 -> vector<8x768xf32>
    %c56_61 = arith.constant 56 : index
    %c0_62 = arith.constant 0 : index
    %101 = vector.load %arg10[%c56_61, %c0_62] : memref<64x768xf32, #tpu.memory_space<vmem>>, vector<8x768xf32>
    tpu.vector_store %arg10[%c56_61, %c0_62], %100 {strides = array<i32>} : memref<64x768xf32, #tpu.memory_space<vmem>>, vector<8x768xf32>,
    %c0_63 = arith.constant 0 : index
    %c0_64 = arith.constant 0 : index
    %102 = vector.load %arg5[%c0_63, %c0_64] : memref<8x64xf32, #tpu.memory_space<vmem>>, vector<8x64xf32>
    %c0_65 = arith.constant 0 : index
    %c0_66 = arith.constant 0 : index
    %103 = vector.load %arg10[%c0_65, %c0_66] : memref<64x768xf32, #tpu.memory_space<vmem>>, vector<64x768xf32>
    %cst_67 = arith.constant dense<0.000000e+00> : vector<8x768xf32>
    %104 = tpu.matmul %102, %103, %cst_67 {dimension_numbers = #tpu.dot_dimension_numbers<[1], [0], [0], [1], [0, 0, 1, 1], [], []>} : vector<8x64xf32>, vector<64x768xf32>, vector<8x768xf32> -> vector<8x768xf32>
    %c0_68 = arith.constant 0 : index
    %c0_69 = arith.constant 0 : index
    %105 = vector.load %arg6[%c0_68, %c0_69] : memref<8x8xf32, #tpu.memory_space<vmem>>, vector<8x8xf32>
    %cst_70 = arith.constant dense<0.000000e+00> : vector<8x768xf32>
    %106 = tpu.matmul %105, %85, %cst_70 {dimension_numbers = #tpu.dot_dimension_numbers<[1], [0], [0], [1], [0, 0, 1, 1], [], []>} : vector<8x8xf32>, vector<8x768xf32>, vector<8x768xf32> -> vector<8x768xf32>
    %107 = arith.addf %104, %106 : vector<8x768xf32>
    %108 = vector.broadcast %31 : vector<1x768xf32> to vector<8x768xf32>
    %109 = arith.mulf %107, %108 : vector<8x768xf32>
    %cst_71 = arith.constant dense<0.000000e+00> : vector<8xf32>
    %110 = vector.multi_reduction <add>, %109, %cst_71 [1] : vector<8x768xf32> to vector<8xf32>
    %111 = vector.shape_cast %110 : vector<8xf32> to vector<8x1xf32>
    %cst_72 = arith.constant 0.001953125 : f32
    %112 = vector.broadcast %cst_72 : f32 to vector<8x1xf32>
    %113 = arith.mulf %111, %112 : vector<8x1xf32>
    %114 = vector.broadcast %113 : vector<8x1xf32> to vector<8x768xf32>
    %115 = arith.subf %107, %114 : vector<8x768xf32>
    %116 = vector.broadcast %31 : vector<1x768xf32> to vector<8x768xf32>
    %117 = arith.mulf %115, %116 : vector<8x768xf32>
    %118 = arith.mulf %117, %117 : vector<8x768xf32>
    %cst_73 = arith.constant dense<0.000000e+00> : vector<8xf32>
    %119 = vector.multi_reduction <add>, %118, %cst_73 [1] : vector<8x768xf32> to vector<8xf32>
    %120 = vector.shape_cast %119 : vector<8xf32> to vector<8x1xf32>
    %cst_74 = arith.constant 0.001953125 : f32
    %121 = vector.broadcast %cst_74 : f32 to vector<8x1xf32>
    %122 = arith.mulf %120, %121 : vector<8x1xf32>
    %cst_75 = arith.constant 9.99999974E-6 : f32
    %123 = vector.broadcast %cst_75 : f32 to vector<8x1xf32>
    %124 = arith.addf %122, %123 : vector<8x1xf32>
    %125 = math.rsqrt %124 : vector<8x1xf32>
    %c0_76 = arith.constant 0 : index
    %c0_77 = arith.constant 0 : index
    %126 = vector.load %arg7[%c0_76, %c0_77] : memref<8x1xf32, #tpu.memory_space<vmem>>, vector<8x1xf32>
    %127 = arith.mulf %125, %126 : vector<8x1xf32>
    %128 = vector.broadcast %127 : vector<8x1xf32> to vector<8x768xf32>
    %129 = arith.mulf %117, %128 : vector<8x768xf32>
    %c0_78 = arith.constant 0 : index
    %c0_79 = arith.constant 0 : index
    %130 = vector.load %arg8[%c0_78, %c0_79] : memref<8x1xf32, #tpu.memory_space<vmem>>, vector<8x1xf32>
    %131 = vector.broadcast %130 : vector<8x1xf32> to vector<8x768xf32>
    %132 = arith.addf %129, %131 : vector<8x768xf32>
    %133 = arith.addf %132, %0 : vector<8x768xf32>
    %cst_80 = arith.constant 0.000000e+00 : f32
    %134 = vector.broadcast %cst_80 : f32 to vector<8x768xf32>
    %135 = arith.cmpf oge, %133, %134 : vector<8x768xf32>
    %cst_81 = arith.constant 1.000000e-01 : f32
    %136 = vector.broadcast %cst_81 : f32 to vector<8x768xf32>
    %137 = arith.mulf %136, %133 : vector<8x768xf32>
    %138 = arith.select %135, %133, %137 : vector<8x768xi1>, vector<8x768xf32>
    %c0_82 = arith.constant 0 : index
    %c0_83 = arith.constant 0 : index
    %139 = vector.load %arg9[%c0_82, %c0_83] : memref<8x768xf32, #tpu.memory_space<vmem>>, vector<8x768xf32>
    tpu.vector_store %arg9[%c0_82, %c0_83], %138 {strides = array<i32>} : memref<8x768xf32, #tpu.memory_space<vmem>>, vector<8x768xf32>,
    return
  }
}

</mosaic_0001>

<llo_original>
// kernel: tpu_custom_call.1
$region0: #{tpu_custom_call.1}
  #allocation0 [shape = 'u32[]', space=smem, size = 0x4, offset = 0x4, fixed_abs, tag = 'smem constant byte address 0x4 - core index']
  #allocation1 [shape = 'u32[144,128]{1,0:T(1,128)}', space=vmem, size = 0x12000, scoped, tag = 'internal scratch']
  %s0 = inlined_call_operand.hbm [shape: s32[8,128], index: 0, kind: input, shape index: {}]
  %s1 = inlined_call_operand.hbm [shape: s32[8,128], index: 1, kind: output, shape index: {}]
  %s2 = sld [smem:[#allocation0]]
  $region18: #{tpu_custom_call.1} parent=0
    _
  %s4 = ssub.s32 1, %s2
  %s5 = scalar_select 0, %s4, %s2
  $region1: #{tpu_custom_call.1} parent=0
    #allocation2 [shape = 'u8[4096]{0}', space=vmem, size = 0x1000, scoped, tag = 'input window, operand 0, single buffered']
    #allocation3 [shape = 's32[1]{0}', space=sflag, size = 0x4, scoped, tag = 'scoped memory for tpu_custom_call.1']
    #allocation4 [shape = 's32[1]{0}', space=sflag, size = 0x4, scoped, tag = 'scoped memory for tpu_custom_call.1']
    #allocation5 [shape = 'u8[4096]{0}', space=vmem, size = 0x1000, scoped, tag = 'output window, operand 0, single buffered']
    %6 = vsyncpa [#allocation3], 0
    %7 = vsyncpa [#allocation4], 0
    // Predicated region
    $region2: #{tpu_custom_call.1} parent=1 // pred_check
      _
    $region3: #{tpu_custom_call.1} parent=1 // pred_check_branch
      %9 = sbr.rel (0) target = $region5
    $region4: #{tpu_custom_call.1} parent=1 // pred_region
      %s11 = ssub.s32 128, 128
      %12 = vsyncadd [#allocation3], %s11
      %s14 = sshll.u32 [#allocation2], 4
      %s15 = int_to_ptr.vmem [resolvable:$true] %s14
      %17 = dma.hbm_to_vmem [thread:$0]  %s0, 128, %s15, [#allocation3]
    $region5: #{tpu_custom_call.1} parent=1 // pred_fallthru
      _
    // Predicated region
    $region6: #{tpu_custom_call.1} parent=1 // pred_check
      _
    $region7: #{tpu_custom_call.1} parent=1 // pred_check_branch
      %19 = sbr.rel (0) target = $region9
    $region8: #{tpu_custom_call.1} parent=1 // pred_region
      %20 = dma.done [#allocation3], 128
    $region9: #{tpu_custom_call.1} parent=1 // pred_fallthru
      _
    %v21 = vld [vmem:[#allocation2] sm:$0xff]
    %22 = vrot.lane.b32.xlu0 %v21, 1
    %v23 = vpop.permute.xlu0 %22
    %24 = vst [vmem:[#allocation5] sm:$0xff] %v23
    // Predicated region
    $region10: #{tpu_custom_call.1} parent=1 // pred_check
      _
    $region11: #{tpu_custom_call.1} parent=1 // pred_check_branch
      %26 = sbr.rel (0) target = $region13
    $region12: #{tpu_custom_call.1} parent=1 // pred_region
      %s28 = ssub.s32 128, 128
      %29 = vsyncadd [#allocation4], %s28
      %s31 = sshll.u32 [#allocation5], 4
      %s32 = int_to_ptr.vmem [resolvable:$true] %s31
      %34 = dma.vmem_to_hbm [thread:$0]  %s32, 128, %s1, [#allocation4]
    $region13: #{tpu_custom_call.1} parent=1 // pred_fallthru
      _
    // Predicated region
    $region14: #{tpu_custom_call.1} parent=1 // pred_check
      _
    $region15: #{tpu_custom_call.1} parent=1 // pred_check_branch
      %36 = sbr.rel (0) target = $region17
    $region16: #{tpu_custom_call.1} parent=1 // pred_region
      %37 = dma.done [#allocation4], 128
    $region17: #{tpu_custom_call.1} parent=1 // pred_fallthru
      _
    %38 = vsyncpa [#allocation3], 1
    %39 = vsyncpa [#allocation4], 1

// kernel: tpu_custom_call.1
$region0: #{tpu_custom_call.1}
  #allocation0 [shape = 'u32[]', space=smem, size = 0x4, offset = 0x4, fixed_abs, tag = 'smem constant byte address 0x4 - core index']
  #allocation1 [shape = 'u32[144,128]{1,0:T(1,128)}', space=vmem, size = 0x12000, scoped, tag = 'internal scratch']
  #allocation2 [shape = 'f32[64,768]{1,0:T(8,128)}', space=vmem, size = 0x30000, scoped, tag = 'scratch operand']
  %s0 = inlined_call_operand.hbm [shape: f32[8,768], index: 0, kind: input, shape index: {}]
  %s1 = inlined_call_operand.vmem [shape: f32[8,64], index: 1, kind: input, shape index: {}]
  %s2 = inlined_call_operand.vmem [shape: f32[8,8], index: 2, kind: input, shape index: {}]
  %s3 = inlined_call_operand.vmem [shape: f32[8,1], index: 3, kind: input, shape index: {}]
  %s4 = inlined_call_operand.vmem [shape: f32[8,1], index: 4, kind: input, shape index: {}]
  %s5 = inlined_call_operand.vmem [shape: f32[8,64], index: 5, kind: input, shape index: {}]
  %s6 = inlined_call_operand.vmem [shape: f32[8,8], index: 6, kind: input, shape index: {}]
  %s7 = inlined_call_operand.vmem [shape: f32[8,1], index: 7, kind: input, shape index: {}]
  %s8 = inlined_call_operand.vmem [shape: f32[8,1], index: 8, kind: input, shape index: {}]
  %s9 = inlined_call_operand.hbm [shape: f32[8,768], index: 9, kind: output, shape index: {}]
  %s10 = sld [smem:[#allocation0]]
  $region50: #{tpu_custom_call.1} parent=0
    _
  %s12 = ssub.s32 1, %s10
  %s13 = scalar_select 0, %s12, %s10
  $region1: #{tpu_custom_call.1} parent=0
    #allocation3 [shape = 'u8[24576]{0}', space=vmem, size = 0x6000, scoped, tag = 'input window, operand 0, single buffered']
    #allocation4 [shape = 's32[1]{0}', space=sflag, size = 0x4, scoped, tag = 'scoped memory for tpu_custom_call.1']
    #allocation5 [shape = 's32[1]{0}', space=sflag, size = 0x4, scoped, tag = 'scoped memory for tpu_custom_call.1']
    #allocation6 [shape = 'u8[24576]{0}', space=vmem, size = 0x6000, scoped, tag = 'output window, operand 0, single buffered']
    %14 = vsyncpa [#allocation4], 0
    %15 = vsyncpa [#allocation5], 0
    // Predicated region
    $region2: #{tpu_custom_call.1} parent=1 // pred_check
      _
    $region3: #{tpu_custom_call.1} parent=1 // pred_check_branch
      %17 = sbr.rel (0) target = $region5
    $region4: #{tpu_custom_call.1} parent=1 // pred_region
      %s19 = ssub.s32 768, 768
      %20 = vsyncadd [#allocation4], %s19
      %s22 = sshll.u32 [#allocation3], 4
      %s23 = int_to_ptr.vmem [resolvable:$true] %s22
      %25 = dma.hbm_to_vmem [thread:$0]  %s0, 768, %s23, [#allocation4]
    $region5: #{tpu_custom_call.1} parent=1 // pred_fallthru
      _
    // Predicated region
    $region6: #{tpu_custom_call.1} parent=1 // pred_check
      _
    $region7: #{tpu_custom_call.1} parent=1 // pred_check_branch
      %27 = sbr.rel (0) target = $region9
    $region8: #{tpu_custom_call.1} parent=1 // pred_region
      _
    $region9: #{tpu_custom_call.1} parent=1 // pred_fallthru
      _
    // Predicated region
    $region10: #{tpu_custom_call.1} parent=1 // pred_check
      _
    $region11: #{tpu_custom_call.1} parent=1 // pred_check_branch
      %29 = sbr.rel (0) target = $region13
    $region12: #{tpu_custom_call.1} parent=1 // pred_region
      _
    $region13: #{tpu_custom_call.1} parent=1 // pred_fallthru
      _
    // Predicated region
    $region14: #{tpu_custom_call.1} parent=1 // pred_check
      _
    $region15: #{tpu_custom_call.1} parent=1 // pred_check_branch
      %31 = sbr.rel (0) target = $region17
    $region16: #{tpu_custom_call.1} parent=1 // pred_region
      _
    $region17: #{tpu_custom_call.1} parent=1 // pred_fallthru
      _
    // Predicated region
    $region18: #{tpu_custom_call.1} parent=1 // pred_check
      _
    $region19: #{tpu_custom_call.1} parent=1 // pred_check_branch
      %33 = sbr.rel (0) target = $region21
    $region20: #{tpu_custom_call.1} parent=1 // pred_region
      _
    $region21: #{tpu_custom_call.1} parent=1 // pred_fallthru
      _
    // Predicated region
    $region22: #{tpu_custom_call.1} parent=1 // pred_check
      _
    $region23: #{tpu_custom_call.1} parent=1 // pred_check_branch
      %35 = sbr.rel (0) target = $region25
    $region24: #{tpu_custom_call.1} parent=1 // pred_region
      _
    $region25: #{tpu_custom_call.1} parent=1 // pred_fallthru
      _
    // Predicated region
    $region26: #{tpu_custom_call.1} parent=1 // pred_check
      _
    $region27: #{tpu_custom_call.1} parent=1 // pred_check_branch
      %37 = sbr.rel (0) target = $region29
    $region28: #{tpu_custom_call.1} parent=1 // pred_region
      _
    $region29: #{tpu_custom_call.1} parent=1 // pred_fallthru
      _
    // Predicated region
    $region30: #{tpu_custom_call.1} parent=1 // pred_check
      _
    $region31: #{tpu_custom_call.1} parent=1 // pred_check_branch
      %39 = sbr.rel (0) target = $region33
    $region32: #{tpu_custom_call.1} parent=1 // pred_region
      _
    $region33: #{tpu_custom_call.1} parent=1 // pred_fallthru
      _
    // Predicated region
    $region34: #{tpu_custom_call.1} parent=1 // pred_check
      _
    $region35: #{tpu_custom_call.1} parent=1 // pred_check_branch
      %41 = sbr.rel (0) target = $region37
    $region36: #{tpu_custom_call.1} parent=1 // pred_region
      _
    $region37: #{tpu_custom_call.1} parent=1 // pred_fallthru
      _
    // Predicated region
    $region38: #{tpu_custom_call.1} parent=1 // pred_check
      _
    $region39: #{tpu_custom_call.1} parent=1 // pred_check_branch
      %43 = sbr.rel (0) target = $region41
    $region40: #{tpu_custom_call.1} parent=1 // pred_region
      %44 = dma.done [#allocation4], 768
    $region41: #{tpu_custom_call.1} parent=1 // pred_fallthru
      _
    %v45 = vld [vmem:[#allocation3] sm:$0xff]
    %v46 = vld [vmem:[#allocation3 + $0x8] sm:$0xff]
    %v47 = vld [vmem:[#allocation3 + $0x10] sm:$0xff]
    %v48 = vld [vmem:[#allocation3 + $0x18] sm:$0xff]
    %v49 = vld [vmem:[#allocation3 + $0x20] sm:$0xff]
    %v50 = vld [vmem:[#allocation3 + $0x28] sm:$0xff]
    %v51 = vlaneseq
    %v52 = vand.u32 %v51, 127
    %v53 = vadd.s32 %v52, 128
    %v54 = vadd.s32 %v52, 256
    %v55 = vadd.s32 %v52, 384
    %v56 = vadd.s32 %v52, 512
    %v57 = vadd.s32 %v52, 640
    %v58 = vcvt.s32.f32 %v52
    %v59 = vcvt.s32.f32 %v53
    %v60 = vcvt.s32.f32 %v54
    %v61 = vcvt.s32.f32 %v55
    %v62 = vcvt.s32.f32 %v56
    %v63 = vcvt.s32.f32 %v57
    %v64 = vrcp.pop 324.0
    %v65 = vmul.f32 %v58, %v64
    %v66 = vmul.f32 %v59, %v64
    %v67 = vmul.f32 %v60, %v64
    %v68 = vmul.f32 %v61, %v64
    %v69 = vmul.f32 %v62, %v64
    %v70 = vmul.f32 %v63, %v64
    %v71 = vfloor.f32 %v65
    %v72 = vfloor.f32 %v66
    %v73 = vfloor.f32 %v67
    %v74 = vfloor.f32 %v68
    %v75 = vfloor.f32 %v69
    %v76 = vfloor.f32 %v70
    %v77 = vmul.f32 %v71, 324.0
    %v78 = vmul.f32 %v72, 324.0
    %v79 = vmul.f32 %v73, 324.0
    %v80 = vmul.f32 %v74, 324.0
    %v81 = vmul.f32 %v75, 324.0
    %v82 = vmul.f32 %v76, 324.0
    %v83 = vsub.f32 %v58, %v77
    %v84 = vsub.f32 %v59, %v78
    %v85 = vsub.f32 %v60, %v79
    %v86 = vsub.f32 %v61, %v80
    %v87 = vsub.f32 %v62, %v81
    %v88 = vsub.f32 %v63, %v82
    %v89 = vrcp.pop 18.0
    %v90 = vmul.f32 %v83, %v89
    %v91 = vmul.f32 %v84, %v89
    %v92 = vmul.f32 %v85, %v89
    %v93 = vmul.f32 %v86, %v89
    %v94 = vmul.f32 %v87, %v89
    %v95 = vmul.f32 %v88, %v89
    %v96 = vfloor.f32 %v90
    %v97 = vfloor.f32 %v91
    %v98 = vfloor.f32 %v92
    %v99 = vfloor.f32 %v93
    %v100 = vfloor.f32 %v94
    %v101 = vfloor.f32 %v95
    %v102 = vmul.f32 %v96, 18.0
    %v103 = vmul.f32 %v97, 18.0
    %v104 = vmul.f32 %v98, 18.0
    %v105 = vmul.f32 %v99, 18.0
    %v106 = vmul.f32 %v100, 18.0
    %v107 = vmul.f32 %v101, 18.0
    %v108 = vsub.f32 %v83, %v102
    %v109 = vsub.f32 %v84, %v103
    %v110 = vsub.f32 %v85, %v104
    %v111 = vsub.f32 %v86, %v105
    %v112 = vsub.f32 %v87, %v106
    %v113 = vsub.f32 %v88, %v107
    %vm114 = vcmp.lt.f32.partialorder %v58, 648.0
    %vm115 = vcmp.lt.f32.partialorder %v59, 648.0
    %vm116 = vcmp.lt.f32.partialorder %v60, 648.0
    %vm117 = vcmp.lt.f32.partialorder %v61, 648.0
    %vm118 = vcmp.lt.f32.partialorder %v62, 648.0
    %vm119 = vcmp.lt.f32.partialorder %v63, 648.0
    %vm120 = vcmp.ge.f32.partialorder %v96, 1.0
    %vm121 = vcmp.ge.f32.partialorder %v97, 1.0
    %vm122 = vcmp.ge.f32.partialorder %v98, 1.0
    %vm123 = vcmp.ge.f32.partialorder %v99, 1.0
    %vm124 = vcmp.ge.f32.partialorder %v100, 1.0
    %vm125 = vcmp.ge.f32.partialorder %v101, 1.0
    %vm126 = vmand %vm114, %vm120
    %vm127 = vmand %vm115, %vm121
    %vm128 = vmand %vm116, %vm122
    %vm129 = vmand %vm117, %vm123
    %vm130 = vmand %vm118, %vm124
    %vm131 = vmand %vm119, %vm125
    %vm132 = vcmp.le.f32.partialorder %v96, 16.0
    %vm133 = vcmp.le.f32.partialorder %v97, 16.0
    %vm134 = vcmp.le.f32.partialorder %v98, 16.0
    %vm135 = vcmp.le.f32.partialorder %v99, 16.0
    %vm136 = vcmp.le.f32.partialorder %v100, 16.0
    %vm137 = vcmp.le.f32.partialorder %v101, 16.0
    %vm138 = vmand %vm126, %vm132
    %vm139 = vmand %vm127, %vm133
    %vm140 = vmand %vm128, %vm134
    %vm141 = vmand %vm129, %vm135
    %vm142 = vmand %vm130, %vm136
    %vm143 = vmand %vm131, %vm137
    %vm144 = vcmp.ge.f32.partialorder %v108, 1.0
    %vm145 = vcmp.ge.f32.partialorder %v109, 1.0
    %vm146 = vcmp.ge.f32.partialorder %v110, 1.0
    %vm147 = vcmp.ge.f32.partialorder %v111, 1.0
    %vm148 = vcmp.ge.f32.partialorder %v112, 1.0
    %vm149 = vcmp.ge.f32.partialorder %v113, 1.0
    %vm150 = vmand %vm138, %vm144
    %vm151 = vmand %vm139, %vm145
    %vm152 = vmand %vm140, %vm146
    %vm153 = vmand %vm141, %vm147
    %vm154 = vmand %vm142, %vm148
    %vm155 = vmand %vm143, %vm149
    %vm156 = vcmp.le.f32.partialorder %v108, 16.0
    %vm157 = vcmp.le.f32.partialorder %v109, 16.0
    %vm158 = vcmp.le.f32.partialorder %v110, 16.0
    %vm159 = vcmp.le.f32.partialorder %v111, 16.0
    %vm160 = vcmp.le.f32.partialorder %v112, 16.0
    %vm161 = vcmp.le.f32.partialorder %v113, 16.0
    %vm162 = vmand %vm150, %vm156
    %vm163 = vmand %vm151, %vm157
    %vm164 = vmand %vm152, %vm158
    %vm165 = vmand %vm153, %vm159
    %vm166 = vmand %vm154, %vm160
    %vm167 = vmand %vm155, %vm161
    %v168 = vsel %vm162, 1.0, 0.0
    %v169 = vsel %vm163, 1.0, 0.0
    %v170 = vsel %vm164, 1.0, 0.0
    %v171 = vsel %vm165, 1.0, 0.0
    %v172 = vsel %vm166, 1.0, 0.0
    %v173 = vsel %vm167, 1.0, 0.0
    %174 = vrot.lane.b32.xlu0 %v45, 19
    %v175 = vpop.permute.xlu0 %174
    %176 = vrot.lane.b32.xlu0 %v46, 19
    %v177 = vpop.permute.xlu0 %176
    %178 = vrot.lane.b32.xlu0 %v47, 19
    %v179 = vpop.permute.xlu0 %178
    %180 = vrot.lane.b32.xlu0 %v48, 19
    %v181 = vpop.permute.xlu0 %180
    %182 = vrot.lane.b32.xlu0 %v49, 19
    %v183 = vpop.permute.xlu0 %182
    %184 = vrot.lane.b32.xlu0 %v50, 19
    %v185 = vpop.permute.xlu0 %184
    %vm186 = vcmp.lt.s32.totalorder %v52, 19
    %v187 = vsel %vm186, %v183, %v185
    %v188 = vsel %vm186, %v181, %v183
    %v189 = vsel %vm186, %v179, %v181
    %v190 = vsel %vm186, %v177, %v179
    %v191 = vsel %vm186, %v175, %v177
    %v192 = vsel %vm186, %v185, %v175
    %193 = vst [vmem:[#allocation2] sm:$0xff] %v192
    %194 = vst [vmem:[#allocation2 + $0x8] sm:$0xff] %v191
    %195 = vst [vmem:[#allocation2 + $0x10] sm:$0xff] %v190
    %196 = vst [vmem:[#allocation2 + $0x18] sm:$0xff] %v189
    %197 = vst [vmem:[#allocation2 + $0x20] sm:$0xff] %v188
    %198 = vst [vmem:[#allocation2 + $0x28] sm:$0xff] %v187
    %199 = vrot.lane.b32.xlu0 %v45, 18
    %v200 = vpop.permute.xlu0 %199
    %201 = vrot.lane.b32.xlu0 %v46, 18
    %v202 = vpop.permute.xlu0 %201
    %203 = vrot.lane.b32.xlu0 %v47, 18
    %v204 = vpop.permute.xlu0 %203
    %205 = vrot.lane.b32.xlu0 %v48, 18
    %v206 = vpop.permute.xlu0 %205
    %207 = vrot.lane.b32.xlu0 %v49, 18
    %v208 = vpop.permute.xlu0 %207
    %209 = vrot.lane.b32.xlu0 %v50, 18
    %v210 = vpop.permute.xlu0 %209
    %vm211 = vcmp.lt.s32.totalorder %v52, 18
    %v212 = vsel %vm211, %v208, %v210
    %v213 = vsel %vm211, %v206, %v208
    %v214 = vsel %vm211, %v204, %v206
    %v215 = vsel %vm211, %v202, %v204
    %v216 = vsel %vm211, %v200, %v202
    %v217 = vsel %vm211, %v210, %v200
    %218 = vst [vmem:[#allocation2 + $0x30] sm:$0xff] %v217
    %219 = vst [vmem:[#allocation2 + $0x38] sm:$0xff] %v216
    %220 = vst [vmem:[#allocation2 + $0x40] sm:$0xff] %v215
    %221 = vst [vmem:[#allocation2 + $0x48] sm:$0xff] %v214
    %222 = vst [vmem:[#allocation2 + $0x50] sm:$0xff] %v213
    %223 = vst [vmem:[#allocation2 + $0x58] sm:$0xff] %v212
    %224 = vrot.lane.b32.xlu0 %v45, 17
    %v225 = vpop.permute.xlu0 %224
    %226 = vrot.lane.b32.xlu0 %v46, 17
    %v227 = vpop.permute.xlu0 %226
    %228 = vrot.lane.b32.xlu0 %v47, 17
    %v229 = vpop.permute.xlu0 %228
    %230 = vrot.lane.b32.xlu0 %v48, 17
    %v231 = vpop.permute.xlu0 %230
    %232 = vrot.lane.b32.xlu0 %v49, 17
    %v233 = vpop.permute.xlu0 %232
    %234 = vrot.lane.b32.xlu0 %v50, 17
    %v235 = vpop.permute.xlu0 %234
    %vm236 = vcmp.lt.s32.totalorder %v52, 17
    %v237 = vsel %vm236, %v233, %v235
    %v238 = vsel %vm236, %v231, %v233
    %v239 = vsel %vm236, %v229, %v231
    %v240 = vsel %vm236, %v227, %v229
    %v241 = vsel %vm236, %v225, %v227
    %v242 = vsel %vm236, %v235, %v225
    %243 = vst [vmem:[#allocation2 + $0x60] sm:$0xff] %v242
    %244 = vst [vmem:[#allocation2 + $0x68] sm:$0xff] %v241
    %245 = vst [vmem:[#allocation2 + $0x70] sm:$0xff] %v240
    %246 = vst [vmem:[#allocation2 + $0x78] sm:$0xff] %v239
    %247 = vst [vmem:[#allocation2 + $0x80] sm:$0xff] %v238
    %248 = vst [vmem:[#allocation2 + $0x88] sm:$0xff] %v237
    %249 = vrot.lane.b32.xlu0 %v45, 1
    %v250 = vpop.permute.xlu0 %249
    %251 = vrot.lane.b32.xlu0 %v46, 1
    %v252 = vpop.permute.xlu0 %251
    %253 = vrot.lane.b32.xlu0 %v47, 1
    %v254 = vpop.permute.xlu0 %253
    %255 = vrot.lane.b32.xlu0 %v48, 1
    %v256 = vpop.permute.xlu0 %255
    %257 = vrot.lane.b32.xlu0 %v49, 1
    %v258 = vpop.permute.xlu0 %257
    %259 = vrot.lane.b32.xlu0 %v50, 1
    %v260 = vpop.permute.xlu0 %259
    %vm261 = vcmp.lt.s32.totalorder %v52, 1
    %v262 = vsel %vm261, %v258, %v260
    %v263 = vsel %vm261, %v256, %v258
    %v264 = vsel %vm261, %v254, %v256
    %v265 = vsel %vm261, %v252, %v254
    %v266 = vsel %vm261, %v250, %v252
    %v267 = vsel %vm261, %v260, %v250
    %268 = vst [vmem:[#allocation2 + $0x90] sm:$0xff] %v267
    %269 = vst [vmem:[#allocation2 + $0x98] sm:$0xff] %v266
    %270 = vst [vmem:[#allocation2 + $0xa0] sm:$0xff] %v265
    %271 = vst [vmem:[#allocation2 + $0xa8] sm:$0xff] %v264
    %272 = vst [vmem:[#allocation2 + $0xb0] sm:$0xff] %v263
    %273 = vst [vmem:[#allocation2 + $0xb8] sm:$0xff] %v262
    %274 = vrot.lane.b32.xlu0 %v45, 127
    %v275 = vpop.permute.xlu0 %274
    %276 = vrot.lane.b32.xlu0 %v46, 127
    %v277 = vpop.permute.xlu0 %276
    %278 = vrot.lane.b32.xlu0 %v47, 127
    %v279 = vpop.permute.xlu0 %278
    %280 = vrot.lane.b32.xlu0 %v48, 127
    %v281 = vpop.permute.xlu0 %280
    %282 = vrot.lane.b32.xlu0 %v49, 127
    %v283 = vpop.permute.xlu0 %282
    %284 = vrot.lane.b32.xlu0 %v50, 127
    %v285 = vpop.permute.xlu0 %284
    %vm286 = vcmp.lt.s32.totalorder %v52, 127
    %v287 = vsel %vm286, %v283, %v285
    %v288 = vsel %vm286, %v281, %v283
    %v289 = vsel %vm286, %v279, %v281
    %v290 = vsel %vm286, %v277, %v279
    %v291 = vsel %vm286, %v275, %v277
    %v292 = vsel %vm286, %v285, %v275
    %293 = vst [vmem:[#allocation2 + $0xc0] sm:$0xff] %v291
    %294 = vst [vmem:[#allocation2 + $0xc8] sm:$0xff] %v290
    %295 = vst [vmem:[#allocation2 + $0xd0] sm:$0xff] %v289
    %296 = vst [vmem:[#allocation2 + $0xd8] sm:$0xff] %v288
    %297 = vst [vmem:[#allocation2 + $0xe0] sm:$0xff] %v287
    %298 = vst [vmem:[#allocation2 + $0xe8] sm:$0xff] %v292
    %299 = vrot.lane.b32.xlu0 %v45, 111
    %v300 = vpop.permute.xlu0 %299
    %301 = vrot.lane.b32.xlu0 %v46, 111
    %v302 = vpop.permute.xlu0 %301
    %303 = vrot.lane.b32.xlu0 %v47, 111
    %v304 = vpop.permute.xlu0 %303
    %305 = vrot.lane.b32.xlu0 %v48, 111
    %v306 = vpop.permute.xlu0 %305
    %307 = vrot.lane.b32.xlu0 %v49, 111
    %v308 = vpop.permute.xlu0 %307
    %309 = vrot.lane.b32.xlu0 %v50, 111
    %v310 = vpop.permute.xlu0 %309
    %vm311 = vcmp.lt.s32.totalorder %v52, 111
    %v312 = vsel %vm311, %v308, %v310
    %v313 = vsel %vm311, %v306, %v308
    %v314 = vsel %vm311, %v304, %v306
    %v315 = vsel %vm311, %v302, %v304
    %v316 = vsel %vm311, %v300, %v302
    %v317 = vsel %vm311, %v310, %v300
    %318 = vst [vmem:[#allocation2 + $0xf0] sm:$0xff] %v316
    %319 = vst [vmem:[#allocation2 + $0xf8] sm:$0xff] %v315
    %320 = vst [vmem:[#allocation2 + $0x100] sm:$0xff] %v314
    %321 = vst [vmem:[#allocation2 + $0x108] sm:$0xff] %v313
    %322 = vst [vmem:[#allocation2 + $0x110] sm:$0xff] %v312
    %323 = vst [vmem:[#allocation2 + $0x118] sm:$0xff] %v317
    %324 = vrot.lane.b32.xlu0 %v45, 110
    %v325 = vpop.permute.xlu0 %324
    %326 = vrot.lane.b32.xlu0 %v46, 110
    %v327 = vpop.permute.xlu0 %326
    %328 = vrot.lane.b32.xlu0 %v47, 110
    %v329 = vpop.permute.xlu0 %328
    %330 = vrot.lane.b32.xlu0 %v48, 110
    %v331 = vpop.permute.xlu0 %330
    %332 = vrot.lane.b32.xlu0 %v49, 110
    %v333 = vpop.permute.xlu0 %332
    %334 = vrot.lane.b32.xlu0 %v50, 110
    %v335 = vpop.permute.xlu0 %334
    %vm336 = vcmp.lt.s32.totalorder %v52, 110
    %v337 = vsel %vm336, %v333, %v335
    %v338 = vsel %vm336, %v331, %v333
    %v339 = vsel %vm336, %v329, %v331
    %v340 = vsel %vm336, %v327, %v329
    %v341 = vsel %vm336, %v325, %v327
    %v342 = vsel %vm336, %v335, %v325
    %343 = vst [vmem:[#allocation2 + $0x120] sm:$0xff] %v341
    %344 = vst [vmem:[#allocation2 + $0x128] sm:$0xff] %v340
    %345 = vst [vmem:[#allocation2 + $0x130] sm:$0xff] %v339
    %346 = vst [vmem:[#allocation2 + $0x138] sm:$0xff] %v338
    %347 = vst [vmem:[#allocation2 + $0x140] sm:$0xff] %v337
    %348 = vst [vmem:[#allocation2 + $0x148] sm:$0xff] %v342
    %349 = vrot.lane.b32.xlu0 %v45, 109
    %v350 = vpop.permute.xlu0 %349
    %351 = vrot.lane.b32.xlu0 %v46, 109
    %v352 = vpop.permute.xlu0 %351
    %353 = vrot.lane.b32.xlu0 %v47, 109
    %v354 = vpop.permute.xlu0 %353
    %355 = vrot.lane.b32.xlu0 %v48, 109
    %v356 = vpop.permute.xlu0 %355
    %357 = vrot.lane.b32.xlu0 %v49, 109
    %v358 = vpop.permute.xlu0 %357
    %359 = vrot.lane.b32.xlu0 %v50, 109
    %v360 = vpop.permute.xlu0 %359
    %vm361 = vcmp.lt.s32.totalorder %v52, 109
    %v362 = vsel %vm361, %v358, %v360
    %v363 = vsel %vm361, %v356, %v358
    %v364 = vsel %vm361, %v354, %v356
    %v365 = vsel %vm361, %v352, %v354
    %v366 = vsel %vm361, %v350, %v352
    %v367 = vsel %vm361, %v360, %v350
    %368 = vst [vmem:[#allocation2 + $0x150] sm:$0xff] %v366
    %369 = vst [vmem:[#allocation2 + $0x158] sm:$0xff] %v365
    %370 = vst [vmem:[#allocation2 + $0x160] sm:$0xff] %v364
    %371 = vst [vmem:[#allocation2 + $0x168] sm:$0xff] %v363
    %372 = vst [vmem:[#allocation2 + $0x170] sm:$0xff] %v362
    %373 = vst [vmem:[#allocation2 + $0x178] sm:$0xff] %v367
    %v374 = vld [vmem:[%s1] sm:$0xff]
    %v375 = vld [vmem:[#allocation2] sm:$0xff]
    %v376 = vld [vmem:[#allocation2 + $0x8] sm:$0xff]
    %v377 = vld [vmem:[#allocation2 + $0x10] sm:$0xff]
    %v378 = vld [vmem:[#allocation2 + $0x18] sm:$0xff]
    %v379 = vld [vmem:[#allocation2 + $0x20] sm:$0xff]
    %v380 = vld [vmem:[#allocation2 + $0x28] sm:$0xff]
    %v381 = vld [vmem:[#allocation2 + $0x30] sm:$0xff]
    %v382 = vld [vmem:[#allocation2 + $0x38] sm:$0xff]
    %v383 = vld [vmem:[#allocation2 + $0x40] sm:$0xff]
    %v384 = vld [vmem:[#allocation2 + $0x48] sm:$0xff]
    %v385 = vld [vmem:[#allocation2 + $0x50] sm:$0xff]
    %v386 = vld [vmem:[#allocation2 + $0x58] sm:$0xff]
    %v387 = vld [vmem:[#allocation2 + $0x60] sm:$0xff]
    %v388 = vld [vmem:[#allocation2 + $0x68] sm:$0xff]
    %v389 = vld [vmem:[#allocation2 + $0x70] sm:$0xff]
    %v390 = vld [vmem:[#allocation2 + $0x78] sm:$0xff]
    %v391 = vld [vmem:[#allocation2 + $0x80] sm:$0xff]
    %v392 = vld [vmem:[#allocation2 + $0x88] sm:$0xff]
    %v393 = vld [vmem:[#allocation2 + $0x90] sm:$0xff]
    %v394 = vld [vmem:[#allocation2 + $0x98] sm:$0xff]
    %v395 = vld [vmem:[#allocation2 + $0xa0] sm:$0xff]
    %v396 = vld [vmem:[#allocation2 + $0xa8] sm:$0xff]
    %v397 = vld [vmem:[#allocation2 + $0xb0] sm:$0xff]
    %v398 = vld [vmem:[#allocation2 + $0xb8] sm:$0xff]
    %v399 = vld [vmem:[#allocation2 + $0xc0] sm:$0xff]
    %v400 = vld [vmem:[#allocation2 + $0xc8] sm:$0xff]
    %v401 = vld [vmem:[#allocation2 + $0xd0] sm:$0xff]
    %v402 = vld [vmem:[#allocation2 + $0xd8] sm:$0xff]
    %v403 = vld [vmem:[#allocation2 + $0xe0] sm:$0xff]
    %v404 = vld [vmem:[#allocation2 + $0xe8] sm:$0xff]
    %v405 = vld [vmem:[#allocation2 + $0xf0] sm:$0xff]
    %v406 = vld [vmem:[#allocation2 + $0xf8] sm:$0xff]
    %v407 = vld [vmem:[#allocation2 + $0x100] sm:$0xff]
    %v408 = vld [vmem:[#allocation2 + $0x108] sm:$0xff]
    %v409 = vld [vmem:[#allocation2 + $0x110] sm:$0xff]
    %v410 = vld [vmem:[#allocation2 + $0x118] sm:$0xff]
    %v411 = vld [vmem:[#allocation2 + $0x120] sm:$0xff]
    %v412 = vld [vmem:[#allocation2 + $0x128] sm:$0xff]
    %v413 = vld [vmem:[#allocation2 + $0x130] sm:$0xff]
    %v414 = vld [vmem:[#allocation2 + $0x138] sm:$0xff]
    %v415 = vld [vmem:[#allocation2 + $0x140] sm:$0xff]
    %v416 = vld [vmem:[#allocation2 + $0x148] sm:$0xff]
    %v417 = vld [vmem:[#allocation2 + $0x150] sm:$0xff]
    %v418 = vld [vmem:[#allocation2 + $0x158] sm:$0xff]
    %v419 = vld [vmem:[#allocation2 + $0x160] sm:$0xff]
    %v420 = vld [vmem:[#allocation2 + $0x168] sm:$0xff]
    %v421 = vld [vmem:[#allocation2 + $0x170] sm:$0xff]
    %v422 = vld [vmem:[#allocation2 + $0x178] sm:$0xff]
    %v423 = vld [vmem:[%s2] sm:$0xff]
    %vm424 = vcmask 64512
    %v426 = vsel %vm424, %v423, 0
    %428 = vmatprep.subr.mxu0 %v46
    %429 = vmatpush1.msra.mxu0 %v45
    %430 = vmatprep.subr.mxu0 0.0
    %431 = vmatpush1.msra.mxu0 0.0
    %432 = vmatprep.subr.mxu0 0.0
    %433 = vmatpush1.msra.mxu0 0.0
    %434 = vmatprep.subr.mxu0 0.0
    %435 = vmatpush1.msra.mxu0 0.0
    %436 = vmatprep.subr.mxu0 0.0
    %437 = vmatpush1.msra.mxu0 0.0
    %438 = vmatprep.subr.mxu0 0.0
    %439 = vmatpush1.msra.mxu0 0.0
    %440 = vmatprep.subr.mxu0 0.0
    %441 = vmatpush1.msra.mxu0 0.0
    %442 = vmatprep.subr.mxu0 0.0
    %443 = vmatpush1.msra.mxu0 0.0
    %444 = vmatprep.subr.mxu0 0.0
    %445 = vmatpush1.msra.mxu0 0.0
    %446 = vmatprep.subr.mxu0 0.0
    %447 = vmatpush1.msra.mxu0 0.0
    %448 = vmatprep.subr.mxu0 0.0
    %449 = vmatpush1.msra.mxu0 0.0
    %450 = vmatprep.subr.mxu0 0.0
    %451 = vmatpush1.msra.mxu0 0.0
    %452 = vmatprep.subr.mxu0 0.0
    %453 = vmatpush1.msra.mxu0 0.0
    %454 = vmatprep.subr.mxu0 0.0
    %455 = vmatpush1.msra.mxu0 0.0
    %456 = vmatprep.subr.mxu0 0.0
    %457 = vmatpush1.msra.mxu0 0.0
    %458 = vmatprep.subr.mxu0 0.0
    %459 = vmatpush1.msra.mxu0 0.0
    %460 = vmatprep.subr.mxu0 0.0
    %461 = vmatpush1.msra.mxu0 0.0
    %462 = vmatprep.subr.mxu0 0.0
    %463 = vmatpush1.msra.mxu0 0.0
    %464 = vmatprep.subr.mxu0 0.0
    %465 = vmatpush1.msra.mxu0 0.0
    %466 = vmatprep.subr.mxu0 0.0
    %467 = vmatpush1.msra.mxu0 0.0
    %468 = vmatprep.subr.mxu0 0.0
    %469 = vmatpush1.msra.mxu0 0.0
    %470 = vmatprep.subr.mxu0 0.0
    %471 = vmatpush1.msra.mxu0 0.0
    %472 = vmatprep.subr.mxu0 0.0
    %473 = vmatpush1.msra.mxu0 0.0
    %474 = vmatprep.subr.mxu0 0.0
    %475 = vmatpush1.msra.mxu0 0.0
    %476 = vmatprep.subr.mxu0 0.0
    %477 = vmatpush1.msra.mxu0 0.0
    %478 = vmatprep.subr.mxu0 0.0
    %479 = vmatpush1.msra.mxu0 0.0
    %480 = vmatprep.subr.mxu0 0.0
    %481 = vmatpush1.msra.mxu0 0.0
    %482 = vmatprep.subr.mxu0 0.0
    %483 = vmatpush1.msra.mxu0 0.0
    %484 = vmatprep.subr.mxu0 0.0
    %485 = vmatpush1.msra.mxu0 0.0
    %486 = vmatprep.subr.mxu0 0.0
    %487 = vmatpush1.msra.mxu0 0.0
    %488 = vmatprep.subr.mxu0 0.0
    %489 = vmatpush1.msra.mxu0 0.0
    %490 = vmatprep.subr.mxu0 0.0
    %491 = vmatpush1.msra.mxu0 0.0
    %492 = vmatprep.mubr.f32.mxu0 0.0
    %493 = vmatmul.mubr.f32.gmra.mrb[0].mxu0 %v426
    %v494 = vpop.f32.mrb[0].mxu0
    %v495 = vadd.f32 0.0, %v494
    %v496 = vpop.f32.mrb[0].mxu0
    %v497 = vadd.f32 0.0, %v496
    %498 = vdwg.mxu0
    %499 = vmatprep.subr.mxu0 %v48
    %500 = vmatpush1.msra.mxu0 %v47
    %501 = vmatprep.subr.mxu0 0.0
    %502 = vmatpush1.msra.mxu0 0.0
    %503 = vmatprep.subr.mxu0 0.0
    %504 = vmatpush1.msra.mxu0 0.0
    %505 = vmatprep.subr.mxu0 0.0
    %506 = vmatpush1.msra.mxu0 0.0
    %507 = vmatprep.subr.mxu0 0.0
    %508 = vmatpush1.msra.mxu0 0.0
    %509 = vmatprep.subr.mxu0 0.0
    %510 = vmatpush1.msra.mxu0 0.0
    %511 = vmatprep.subr.mxu0 0.0
    %512 = vmatpush1.msra.mxu0 0.0
    %513 = vmatprep.subr.mxu0 0.0
    %514 = vmatpush1.msra.mxu0 0.0
    %515 = vmatprep.subr.mxu0 0.0
    %516 = vmatpush1.msra.mxu0 0.0
    %517 = vmatprep.subr.mxu0 0.0
    %518 = vmatpush1.msra.mxu0 0.0
    %519 = vmatprep.subr.mxu0 0.0
    %520 = vmatpush1.msra.mxu0 0.0
    %521 = vmatprep.subr.mxu0 0.0
    %522 = vmatpush1.msra.mxu0 0.0
    %523 = vmatprep.subr.mxu0 0.0
    %524 = vmatpush1.msra.mxu0 0.0
    %525 = vmatprep.subr.mxu0 0.0
    %526 = vmatpush1.msra.mxu0 0.0
    %527 = vmatprep.subr.mxu0 0.0
    %528 = vmatpush1.msra.mxu0 0.0
    %529 = vmatprep.subr.mxu0 0.0
    %530 = vmatpush1.msra.mxu0 0.0
    %531 = vmatprep.subr.mxu0 0.0
    %532 = vmatpush1.msra.mxu0 0.0
    %533 = vmatprep.subr.mxu0 0.0
    %534 = vmatpush1.msra.mxu0 0.0
    %535 = vmatprep.subr.mxu0 0.0
    %536 = vmatpush1.msra.mxu0 0.0
    %537 = vmatprep.subr.mxu0 0.0
    %538 = vmatpush1.msra.mxu0 0.0
    %539 = vmatprep.subr.mxu0 0.0
    %540 = vmatpush1.msra.mxu0 0.0
    %541 = vmatprep.subr.mxu0 0.0
    %542 = vmatpush1.msra.mxu0 0.0
    %543 = vmatprep.subr.mxu0 0.0
    %544 = vmatpush1.msra.mxu0 0.0
    %545 = vmatprep.subr.mxu0 0.0
    %546 = vmatpush1.msra.mxu0 0.0
    %547 = vmatprep.subr.mxu0 0.0
    %548 = vmatpush1.msra.mxu0 0.0
    %549 = vmatprep.subr.mxu0 0.0
    %550 = vmatpush1.msra.mxu0 0.0
    %551 = vmatprep.subr.mxu0 0.0
    %552 = vmatpush1.msra.mxu0 0.0
    %553 = vmatprep.subr.mxu0 0.0
    %554 = vmatpush1.msra.mxu0 0.0
    %555 = vmatprep.subr.mxu0 0.0
    %556 = vmatpush1.msra.mxu0 0.0
    %557 = vmatprep.subr.mxu0 0.0
    %558 = vmatpush1.msra.mxu0 0.0
    %559 = vmatprep.subr.mxu0 0.0
    %560 = vmatpush1.msra.mxu0 0.0
    %561 = vmatprep.subr.mxu0 0.0
    %562 = vmatpush1.msra.mxu0 0.0
    %563 = vmatprep.mubr.f32.mxu0 0.0
    %564 = vmatmul.mubr.f32.gmra.mrb[0].mxu0 %v426
    %v565 = vpop.f32.mrb[0].mxu0
    %v566 = vadd.f32 0.0, %v565
    %v567 = vpop.f32.mrb[0].mxu0
    %v568 = vadd.f32 0.0, %v567
    %569 = vdwg.mxu0
    %570 = vmatprep.subr.mxu0 %v50
    %571 = vmatpush1.msra.mxu0 %v49
    %572 = vmatprep.subr.mxu0 0.0
    %573 = vmatpush1.msra.mxu0 0.0
    %574 = vmatprep.subr.mxu0 0.0
    %575 = vmatpush1.msra.mxu0 0.0
    %576 = vmatprep.subr.mxu0 0.0
    %577 = vmatpush1.msra.mxu0 0.0
    %578 = vmatprep.subr.mxu0 0.0
    %579 = vmatpush1.msra.mxu0 0.0
    %580 = vmatprep.subr.mxu0 0.0
    %581 = vmatpush1.msra.mxu0 0.0
    %582 = vmatprep.subr.mxu0 0.0
    %583 = vmatpush1.msra.mxu0 0.0
    %584 = vmatprep.subr.mxu0 0.0
    %585 = vmatpush1.msra.mxu0 0.0
    %586 = vmatprep.subr.mxu0 0.0
    %587 = vmatpush1.msra.mxu0 0.0
    %588 = vmatprep.subr.mxu0 0.0
    %589 = vmatpush1.msra.mxu0 0.0
    %590 = vmatprep.subr.mxu0 0.0
    %591 = vmatpush1.msra.mxu0 0.0
    %592 = vmatprep.subr.mxu0 0.0
    %593 = vmatpush1.msra.mxu0 0.0
    %594 = vmatprep.subr.mxu0 0.0
    %595 = vmatpush1.msra.mxu0 0.0
    %596 = vmatprep.subr.mxu0 0.0
    %597 = vmatpush1.msra.mxu0 0.0
    %598 = vmatprep.subr.mxu0 0.0
    %599 = vmatpush1.msra.mxu0 0.0
    %600 = vmatprep.subr.mxu0 0.0
    %601 = vmatpush1.msra.mxu0 0.0
    %602 = vmatprep.subr.mxu0 0.0
    %603 = vmatpush1.msra.mxu0 0.0
    %604 = vmatprep.subr.mxu0 0.0
    %605 = vmatpush1.msra.mxu0 0.0
    %606 = vmatprep.subr.mxu0 0.0
    %607 = vmatpush1.msra.mxu0 0.0
    %608 = vmatprep.subr.mxu0 0.0
    %609 = vmatpush1.msra.mxu0 0.0
    %610 = vmatprep.subr.mxu0 0.0
    %611 = vmatpush1.msra.mxu0 0.0
    %612 = vmatprep.subr.mxu0 0.0
    %613 = vmatpush1.msra.mxu0 0.0
    %614 = vmatprep.subr.mxu0 0.0
    %615 = vmatpush1.msra.mxu0 0.0
    %616 = vmatprep.subr.mxu0 0.0
    %617 = vmatpush1.msra.mxu0 0.0
    %618 = vmatprep.subr.mxu0 0.0
    %619 = vmatpush1.msra.mxu0 0.0
    %620 = vmatprep.subr.mxu0 0.0
    %621 = vmatpush1.msra.mxu0 0.0
    %622 = vmatprep.subr.mxu0 0.0
    %623 = vmatpush1.msra.mxu0 0.0
    %624 = vmatprep.subr.mxu0 0.0
    %625 = vmatpush1.msra.mxu0 0.0
    %626 = vmatprep.subr.mxu0 0.0
    %627 = vmatpush1.msra.mxu0 0.0
    %628 = vmatprep.subr.mxu0 0.0
    %629 = vmatpush1.msra.mxu0 0.0
    %630 = vmatprep.subr.mxu0 0.0
    %631 = vmatpush1.msra.mxu0 0.0
    %632 = vmatprep.subr.mxu0 0.0
    %633 = vmatpush1.msra.mxu0 0.0
    %634 = vmatprep.mubr.f32.mxu0 0.0
    %635 = vmatmul.mubr.f32.gmra.mrb[0].mxu0 %v426
    %v636 = vpop.f32.mrb[0].mxu0
    %v637 = vadd.f32 0.0, %v636
    %v638 = vpop.f32.mrb[0].mxu0
    %v639 = vadd.f32 0.0, %v638
    %640 = vdwg.mxu0
    %vm641 = vcmask 523264
    %v643 = vsel %vm641, %v374, 0
    %645 = vmatprep.subr.mxu0 %v376
    %646 = vmatpush1.msra.mxu0 %v375
    %647 = vmatprep.subr.mxu0 %v382
    %648 = vmatpush1.msra.mxu0 %v381
    %649 = vmatprep.subr.mxu0 %v388
    %650 = vmatpush1.msra.mxu0 %v387
    %651 = vmatprep.subr.mxu0 %v394
    %652 = vmatpush1.msra.mxu0 %v393
    %653 = vmatprep.subr.mxu0 %v400
    %654 = vmatpush1.msra.mxu0 %v399
    %655 = vmatprep.subr.mxu0 %v406
    %656 = vmatpush1.msra.mxu0 %v405
    %657 = vmatprep.subr.mxu0 %v412
    %658 = vmatpush1.msra.mxu0 %v411
    %659 = vmatprep.subr.mxu0 %v418
    %660 = vmatpush1.msra.mxu0 %v417
    %661 = vmatprep.subr.mxu0 0.0
    %662 = vmatpush1.msra.mxu0 0.0
    %663 = vmatprep.subr.mxu0 0.0
    %664 = vmatpush1.msra.mxu0 0.0
    %665 = vmatprep.subr.mxu0 0.0
    %666 = vmatpush1.msra.mxu0 0.0
    %667 = vmatprep.subr.mxu0 0.0
    %668 = vmatpush1.msra.mxu0 0.0
    %669 = vmatprep.subr.mxu0 0.0
    %670 = vmatpush1.msra.mxu0 0.0
    %671 = vmatprep.subr.mxu0 0.0
    %672 = vmatpush1.msra.mxu0 0.0
    %673 = vmatprep.subr.mxu0 0.0
    %674 = vmatpush1.msra.mxu0 0.0
    %675 = vmatprep.subr.mxu0 0.0
    %676 = vmatpush1.msra.mxu0 0.0
    %677 = vmatprep.subr.mxu0 0.0
    %678 = vmatpush1.msra.mxu0 0.0
    %679 = vmatprep.subr.mxu0 0.0
    %680 = vmatpush1.msra.mxu0 0.0
    %681 = vmatprep.subr.mxu0 0.0
    %682 = vmatpush1.msra.mxu0 0.0
    %683 = vmatprep.subr.mxu0 0.0
    %684 = vmatpush1.msra.mxu0 0.0
    %685 = vmatprep.subr.mxu0 0.0
    %686 = vmatpush1.msra.mxu0 0.0
    %687 = vmatprep.subr.mxu0 0.0
    %688 = vmatpush1.msra.mxu0 0.0
    %689 = vmatprep.subr.mxu0 0.0
    %690 = vmatpush1.msra.mxu0 0.0
    %691 = vmatprep.subr.mxu0 0.0
    %692 = vmatpush1.msra.mxu0 0.0
    %693 = vmatprep.subr.mxu0 0.0
    %694 = vmatpush1.msra.mxu0 0.0
    %695 = vmatprep.subr.mxu0 0.0
    %696 = vmatpush1.msra.mxu0 0.0
    %697 = vmatprep.subr.mxu0 0.0
    %698 = vmatpush1.msra.mxu0 0.0
    %699 = vmatprep.subr.mxu0 0.0
    %700 = vmatpush1.msra.mxu0 0.0
    %701 = vmatprep.subr.mxu0 0.0
    %702 = vmatpush1.msra.mxu0 0.0
    %703 = vmatprep.subr.mxu0 0.0
    %704 = vmatpush1.msra.mxu0 0.0
    %705 = vmatprep.subr.mxu0 0.0
    %706 = vmatpush1.msra.mxu0 0.0
    %707 = vmatprep.subr.mxu0 0.0
    %708 = vmatpush1.msra.mxu0 0.0
    %709 = vmatprep.mubr.f32.mxu0 0.0
    %710 = vmatmul.mubr.f32.gmra.mrb[0].mxu0 %v643
    %v711 = vpop.f32.mrb[0].mxu0
    %v712 = vadd.f32 %v495, %v711
    %v713 = vpop.f32.mrb[0].mxu0
    %v714 = vadd.f32 %v497, %v713
    %715 = vdwg.mxu0
    %716 = vmatprep.subr.mxu0 %v378
    %717 = vmatpush1.msra.mxu0 %v377
    %718 = vmatprep.subr.mxu0 %v384
    %719 = vmatpush1.msra.mxu0 %v383
    %720 = vmatprep.subr.mxu0 %v390
    %721 = vmatpush1.msra.mxu0 %v389
    %722 = vmatprep.subr.mxu0 %v396
    %723 = vmatpush1.msra.mxu0 %v395
    %724 = vmatprep.subr.mxu0 %v402
    %725 = vmatpush1.msra.mxu0 %v401
    %726 = vmatprep.subr.mxu0 %v408
    %727 = vmatpush1.msra.mxu0 %v407
    %728 = vmatprep.subr.mxu0 %v414
    %729 = vmatpush1.msra.mxu0 %v413
    %730 = vmatprep.subr.mxu0 %v420
    %731 = vmatpush1.msra.mxu0 %v419
    %732 = vmatprep.subr.mxu0 0.0
    %733 = vmatpush1.msra.mxu0 0.0
    %734 = vmatprep.subr.mxu0 0.0
    %735 = vmatpush1.msra.mxu0 0.0
    %736 = vmatprep.subr.mxu0 0.0
    %737 = vmatpush1.msra.mxu0 0.0
    %738 = vmatprep.subr.mxu0 0.0
    %739 = vmatpush1.msra.mxu0 0.0
    %740 = vmatprep.subr.mxu0 0.0
    %741 = vmatpush1.msra.mxu0 0.0
    %742 = vmatprep.subr.mxu0 0.0
    %743 = vmatpush1.msra.mxu0 0.0
    %744 = vmatprep.subr.mxu0 0.0
    %745 = vmatpush1.msra.mxu0 0.0
    %746 = vmatprep.subr.mxu0 0.0
    %747 = vmatpush1.msra.mxu0 0.0
    %748 = vmatprep.subr.mxu0 0.0
    %749 = vmatpush1.msra.mxu0 0.0
    %750 = vmatprep.subr.mxu0 0.0
    %751 = vmatpush1.msra.mxu0 0.0
    %752 = vmatprep.subr.mxu0 0.0
    %753 = vmatpush1.msra.mxu0 0.0
    %754 = vmatprep.subr.mxu0 0.0
    %755 = vmatpush1.msra.mxu0 0.0
    %756 = vmatprep.subr.mxu0 0.0
    %757 = vmatpush1.msra.mxu0 0.0
    %758 = vmatprep.subr.mxu0 0.0
    %759 = vmatpush1.msra.mxu0 0.0
    %760 = vmatprep.subr.mxu0 0.0
    %761 = vmatpush1.msra.mxu0 0.0
    %762 = vmatprep.subr.mxu0 0.0
    %763 = vmatpush1.msra.mxu0 0.0
    %764 = vmatprep.subr.mxu0 0.0
    %765 = vmatpush1.msra.mxu0 0.0
    %766 = vmatprep.subr.mxu0 0.0
    %767 = vmatpush1.msra.mxu0 0.0
    %768 = vmatprep.subr.mxu0 0.0
    %769 = vmatpush1.msra.mxu0 0.0
    %770 = vmatprep.subr.mxu0 0.0
    %771 = vmatpush1.msra.mxu0 0.0
    %772 = vmatprep.subr.mxu0 0.0
    %773 = vmatpush1.msra.mxu0 0.0
    %774 = vmatprep.subr.mxu0 0.0
    %775 = vmatpush1.msra.mxu0 0.0
    %776 = vmatprep.subr.mxu0 0.0
    %777 = vmatpush1.msra.mxu0 0.0
    %778 = vmatprep.subr.mxu0 0.0
    %779 = vmatpush1.msra.mxu0 0.0
    %780 = vmatprep.mubr.f32.mxu0 0.0
    %781 = vmatmul.mubr.f32.gmra.mrb[0].mxu0 %v643
    %v782 = vpop.f32.mrb[0].mxu0
    %v783 = vadd.f32 %v566, %v782
    %v784 = vpop.f32.mrb[0].mxu0
    %v785 = vadd.f32 %v568, %v784
    %786 = vdwg.mxu0
    %787 = vmatprep.subr.mxu0 %v380
    %788 = vmatpush1.msra.mxu0 %v379
    %789 = vmatprep.subr.mxu0 %v386
    %790 = vmatpush1.msra.mxu0 %v385
    %791 = vmatprep.subr.mxu0 %v392
    %792 = vmatpush1.msra.mxu0 %v391
    %793 = vmatprep.subr.mxu0 %v398
    %794 = vmatpush1.msra.mxu0 %v397
    %795 = vmatprep.subr.mxu0 %v404
    %796 = vmatpush1.msra.mxu0 %v403
    %797 = vmatprep.subr.mxu0 %v410
    %798 = vmatpush1.msra.mxu0 %v409
    %799 = vmatprep.subr.mxu0 %v416
    %800 = vmatpush1.msra.mxu0 %v415
    %801 = vmatprep.subr.mxu0 %v422
    %802 = vmatpush1.msra.mxu0 %v421
    %803 = vmatprep.subr.mxu0 0.0
    %804 = vmatpush1.msra.mxu0 0.0
    %805 = vmatprep.subr.mxu0 0.0
    %806 = vmatpush1.msra.mxu0 0.0
    %807 = vmatprep.subr.mxu0 0.0
    %808 = vmatpush1.msra.mxu0 0.0
    %809 = vmatprep.subr.mxu0 0.0
    %810 = vmatpush1.msra.mxu0 0.0
    %811 = vmatprep.subr.mxu0 0.0
    %812 = vmatpush1.msra.mxu0 0.0
    %813 = vmatprep.subr.mxu0 0.0
    %814 = vmatpush1.msra.mxu0 0.0
    %815 = vmatprep.subr.mxu0 0.0
    %816 = vmatpush1.msra.mxu0 0.0
    %817 = vmatprep.subr.mxu0 0.0
    %818 = vmatpush1.msra.mxu0 0.0
    %819 = vmatprep.subr.mxu0 0.0
    %820 = vmatpush1.msra.mxu0 0.0
    %821 = vmatprep.subr.mxu0 0.0
    %822 = vmatpush1.msra.mxu0 0.0
    %823 = vmatprep.subr.mxu0 0.0
    %824 = vmatpush1.msra.mxu0 0.0
    %825 = vmatprep.subr.mxu0 0.0
    %826 = vmatpush1.msra.mxu0 0.0
    %827 = vmatprep.subr.mxu0 0.0
    %828 = vmatpush1.msra.mxu0 0.0
    %829 = vmatprep.subr.mxu0 0.0
    %830 = vmatpush1.msra.mxu0 0.0
    %831 = vmatprep.subr.mxu0 0.0
    %832 = vmatpush1.msra.mxu0 0.0
    %833 = vmatprep.subr.mxu0 0.0
    %834 = vmatpush1.msra.mxu0 0.0
    %835 = vmatprep.subr.mxu0 0.0
    %836 = vmatpush1.msra.mxu0 0.0
    %837 = vmatprep.subr.mxu0 0.0
    %838 = vmatpush1.msra.mxu0 0.0
    %839 = vmatprep.subr.mxu0 0.0
    %840 = vmatpush1.msra.mxu0 0.0
    %841 = vmatprep.subr.mxu0 0.0
    %842 = vmatpush1.msra.mxu0 0.0
    %843 = vmatprep.subr.mxu0 0.0
    %844 = vmatpush1.msra.mxu0 0.0
    %845 = vmatprep.subr.mxu0 0.0
    %846 = vmatpush1.msra.mxu0 0.0
    %847 = vmatprep.subr.mxu0 0.0
    %848 = vmatpush1.msra.mxu0 0.0
    %849 = vmatprep.subr.mxu0 0.0
    %850 = vmatpush1.msra.mxu0 0.0
    %851 = vmatprep.mubr.f32.mxu0 0.0
    %852 = vmatmul.mubr.f32.gmra.mrb[0].mxu0 %v643
    %v853 = vpop.f32.mrb[0].mxu0
    %v854 = vadd.f32 %v637, %v853
    %v855 = vpop.f32.mrb[0].mxu0
    %v856 = vadd.f32 %v639, %v855
    %857 = vdwg.mxu0
    %v858 = vmul.f32 %v712, %v168
    %v859 = vmul.f32 %v714, %v169
    %v860 = vmul.f32 %v783, %v170
    %v861 = vmul.f32 %v785, %v171
    %v862 = vmul.f32 %v854, %v172
    %v863 = vmul.f32 %v856, %v173
    %v864 = vadd.f32 %v858, %v859
    %v865 = vadd.f32 %v864, %v860
    %v866 = vadd.f32 %v865, %v861
    %v867 = vadd.f32 %v866, %v862
    %v868 = vadd.f32 %v867, %v863
    %869 = vadd.xlane.f32.xlu0 %v868
    %v870 = vpop.xlane.xlu0 %869
    %v871 = vmul.f32 %v870, 0.001953125
    %v872 = vsub.f32 %v712, %v871
    %v873 = vsub.f32 %v714, %v871
    %v874 = vsub.f32 %v783, %v871
    %v875 = vsub.f32 %v785, %v871
    %v876 = vsub.f32 %v854, %v871
    %v877 = vsub.f32 %v856, %v871
    %v878 = vmul.f32 %v872, %v168
    %v879 = vmul.f32 %v873, %v169
    %v880 = vmul.f32 %v874, %v170
    %v881 = vmul.f32 %v875, %v171
    %v882 = vmul.f32 %v876, %v172
    %v883 = vmul.f32 %v877, %v173
    %v884 = vmul.f32 %v878, %v878
    %v885 = vmul.f32 %v879, %v879
    %v886 = vmul.f32 %v880, %v880
    %v887 = vmul.f32 %v881, %v881
    %v888 = vmul.f32 %v882, %v882
    %v889 = vmul.f32 %v883, %v883
    %v890 = vadd.f32 %v884, %v885
    %v891 = vadd.f32 %v890, %v886
    %v892 = vadd.f32 %v891, %v887
    %v893 = vadd.f32 %v892, %v888
    %v894 = vadd.f32 %v893, %v889
    %895 = vadd.xlane.f32.xlu0 %v894
    %v896 = vpop.xlane.xlu0 %895
    %v897 = vmul.f32 %v896, 0.001953125
    %v898 = vadd.f32 %v897, 1e-05
    %v899 = vrsqrt.pop %v898
    %v900 = vld [vmem:[%s3] sm:$0xff]
    %v901 = vmul.f32 %v899, %v900
    %903 = vset.pattern.permute.xlu0 0
    %904 = vperm.xlu0 %903, %v901
    %v905 = vpop.permute.xlu0 %904
    %v907 = vmul.f32 %v878, %v905
    %v908 = vmul.f32 %v879, %v905
    %v909 = vmul.f32 %v880, %v905
    %v910 = vmul.f32 %v881, %v905
    %v911 = vmul.f32 %v882, %v905
    %v912 = vmul.f32 %v883, %v905
    %v913 = vld [vmem:[%s4] sm:$0xff]
    %915 = vset.pattern.permute.xlu0 0
    %916 = vperm.xlu0 %915, %v913
    %v917 = vpop.permute.xlu0 %916
    %v919 = vadd.f32 %v907, %v917
    %v920 = vadd.f32 %v908, %v917
    %v921 = vadd.f32 %v909, %v917
    %v922 = vadd.f32 %v910, %v917
    %v923 = vadd.f32 %v911, %v917
    %v924 = vadd.f32 %v912, %v917
    %vm925 = vcmp.ge.f32.partialorder %v919, 0.0
    %vm926 = vcmp.ge.f32.partialorder %v920, 0.0
    %vm927 = vcmp.ge.f32.partialorder %v921, 0.0
    %vm928 = vcmp.ge.f32.partialorder %v922, 0.0
    %vm929 = vcmp.ge.f32.partialorder %v923, 0.0
    %vm930 = vcmp.ge.f32.partialorder %v924, 0.0
    %v931 = vmul.f32 %v919, 0.1
    %v932 = vmul.f32 %v920, 0.1
    %v933 = vmul.f32 %v921, 0.1
    %v934 = vmul.f32 %v922, 0.1
    %v935 = vmul.f32 %v923, 0.1
    %v936 = vmul.f32 %v924, 0.1
    %v937 = vsel %vm925, %v919, %v931
    %v938 = vsel %vm926, %v920, %v932
    %v939 = vsel %vm927, %v921, %v933
    %v940 = vsel %vm928, %v922, %v934
    %v941 = vsel %vm929, %v923, %v935
    %v942 = vsel %vm930, %v924, %v936
    %v943 = vmul.f32 %v168, %v937
    %v944 = vmul.f32 %v169, %v938
    %v945 = vmul.f32 %v170, %v939
    %v946 = vmul.f32 %v171, %v940
    %v947 = vmul.f32 %v172, %v941
    %v948 = vmul.f32 %v173, %v942
    %949 = vrot.lane.b32.xlu0 %v943, 19
    %v950 = vpop.permute.xlu0 %949
    %951 = vrot.lane.b32.xlu0 %v944, 19
    %v952 = vpop.permute.xlu0 %951
    %953 = vrot.lane.b32.xlu0 %v945, 19
    %v954 = vpop.permute.xlu0 %953
    %955 = vrot.lane.b32.xlu0 %v946, 19
    %v956 = vpop.permute.xlu0 %955
    %957 = vrot.lane.b32.xlu0 %v947, 19
    %v958 = vpop.permute.xlu0 %957
    %959 = vrot.lane.b32.xlu0 %v948, 19
    %v960 = vpop.permute.xlu0 %959
    %v961 = vsel %vm186, %v958, %v960
    %v962 = vsel %vm186, %v956, %v958
    %v963 = vsel %vm186, %v954, %v956
    %v964 = vsel %vm186, %v952, %v954
    %v965 = vsel %vm186, %v950, %v952
    %v966 = vsel %vm186, %v960, %v950
    %967 = vst [vmem:[#allocation2] sm:$0xff] %v966
    %968 = vst [vmem:[#allocation2 + $0x8] sm:$0xff] %v965
    %969 = vst [vmem:[#allocation2 + $0x10] sm:$0xff] %v964
    %970 = vst [vmem:[#allocation2 + $0x18] sm:$0xff] %v963
    %971 = vst [vmem:[#allocation2 + $0x20] sm:$0xff] %v962
    %972 = vst [vmem:[#allocation2 + $0x28] sm:$0xff] %v961
    %973 = vrot.lane.b32.xlu0 %v943, 18
    %v974 = vpop.permute.xlu0 %973
    %975 = vrot.lane.b32.xlu0 %v944, 18
    %v976 = vpop.permute.xlu0 %975
    %977 = vrot.lane.b32.xlu0 %v945, 18
    %v978 = vpop.permute.xlu0 %977
    %979 = vrot.lane.b32.xlu0 %v946, 18
    %v980 = vpop.permute.xlu0 %979
    %981 = vrot.lane.b32.xlu0 %v947, 18
    %v982 = vpop.permute.xlu0 %981
    %983 = vrot.lane.b32.xlu0 %v948, 18
    %v984 = vpop.permute.xlu0 %983
    %v985 = vsel %vm211, %v982, %v984
    %v986 = vsel %vm211, %v980, %v982
    %v987 = vsel %vm211, %v978, %v980
    %v988 = vsel %vm211, %v976, %v978
    %v989 = vsel %vm211, %v974, %v976
    %v990 = vsel %vm211, %v984, %v974
    %991 = vst [vmem:[#allocation2 + $0x30] sm:$0xff] %v990
    %992 = vst [vmem:[#allocation2 + $0x38] sm:$0xff] %v989
    %993 = vst [vmem:[#allocation2 + $0x40] sm:$0xff] %v988
    %994 = vst [vmem:[#allocation2 + $0x48] sm:$0xff] %v987
    %995 = vst [vmem:[#allocation2 + $0x50] sm:$0xff] %v986
    %996 = vst [vmem:[#allocation2 + $0x58] sm:$0xff] %v985
    %997 = vrot.lane.b32.xlu0 %v943, 17
    %v998 = vpop.permute.xlu0 %997
    %999 = vrot.lane.b32.xlu0 %v944, 17
    %v1000 = vpop.permute.xlu0 %999
    %1001 = vrot.lane.b32.xlu0 %v945, 17
    %v1002 = vpop.permute.xlu0 %1001
    %1003 = vrot.lane.b32.xlu0 %v946, 17
    %v1004 = vpop.permute.xlu0 %1003
    %1005 = vrot.lane.b32.xlu0 %v947, 17
    %v1006 = vpop.permute.xlu0 %1005
    %1007 = vrot.lane.b32.xlu0 %v948, 17
    %v1008 = vpop.permute.xlu0 %1007
    %v1009 = vsel %vm236, %v1006, %v1008
    %v1010 = vsel %vm236, %v1004, %v1006
    %v1011 = vsel %vm236, %v1002, %v1004
    %v1012 = vsel %vm236, %v1000, %v1002
    %v1013 = vsel %vm236, %v998, %v1000
    %v1014 = vsel %vm236, %v1008, %v998
    %1015 = vst [vmem:[#allocation2 + $0x60] sm:$0xff] %v1014
    %1016 = vst [vmem:[#allocation2 + $0x68] sm:$0xff] %v1013
    %1017 = vst [vmem:[#allocation2 + $0x70] sm:$0xff] %v1012
    %1018 = vst [vmem:[#allocation2 + $0x78] sm:$0xff] %v1011
    %1019 = vst [vmem:[#allocation2 + $0x80] sm:$0xff] %v1010
    %1020 = vst [vmem:[#allocation2 + $0x88] sm:$0xff] %v1009
    %1021 = vrot.lane.b32.xlu0 %v943, 1
    %v1022 = vpop.permute.xlu0 %1021
    %1023 = vrot.lane.b32.xlu0 %v944, 1
    %v1024 = vpop.permute.xlu0 %1023
    %1025 = vrot.lane.b32.xlu0 %v945, 1
    %v1026 = vpop.permute.xlu0 %1025
    %1027 = vrot.lane.b32.xlu0 %v946, 1
    %v1028 = vpop.permute.xlu0 %1027
    %1029 = vrot.lane.b32.xlu0 %v947, 1
    %v1030 = vpop.permute.xlu0 %1029
    %1031 = vrot.lane.b32.xlu0 %v948, 1
    %v1032 = vpop.permute.xlu0 %1031
    %v1033 = vsel %vm261, %v1030, %v1032
    %v1034 = vsel %vm261, %v1028, %v1030
    %v1035 = vsel %vm261, %v1026, %v1028
    %v1036 = vsel %vm261, %v1024, %v1026
    %v1037 = vsel %vm261, %v1022, %v1024
    %v1038 = vsel %vm261, %v1032, %v1022
    %1039 = vst [vmem:[#allocation2 + $0x90] sm:$0xff] %v1038
    %1040 = vst [vmem:[#allocation2 + $0x98] sm:$0xff] %v1037
    %1041 = vst [vmem:[#allocation2 + $0xa0] sm:$0xff] %v1036
    %1042 = vst [vmem:[#allocation2 + $0xa8] sm:$0xff] %v1035
    %1043 = vst [vmem:[#allocation2 + $0xb0] sm:$0xff] %v1034
    %1044 = vst [vmem:[#allocation2 + $0xb8] sm:$0xff] %v1033
    %1045 = vrot.lane.b32.xlu0 %v943, 127
    %v1046 = vpop.permute.xlu0 %1045
    %1047 = vrot.lane.b32.xlu0 %v944, 127
    %v1048 = vpop.permute.xlu0 %1047
    %1049 = vrot.lane.b32.xlu0 %v945, 127
    %v1050 = vpop.permute.xlu0 %1049
    %1051 = vrot.lane.b32.xlu0 %v946, 127
    %v1052 = vpop.permute.xlu0 %1051
    %1053 = vrot.lane.b32.xlu0 %v947, 127
    %v1054 = vpop.permute.xlu0 %1053
    %1055 = vrot.lane.b32.xlu0 %v948, 127
    %v1056 = vpop.permute.xlu0 %1055
    %v1057 = vsel %vm286, %v1054, %v1056
    %v1058 = vsel %vm286, %v1052, %v1054
    %v1059 = vsel %vm286, %v1050, %v1052
    %v1060 = vsel %vm286, %v1048, %v1050
    %v1061 = vsel %vm286, %v1046, %v1048
    %v1062 = vsel %vm286, %v1056, %v1046
    %1063 = vst [vmem:[#allocation2 + $0xc0] sm:$0xff] %v1061
    %1064 = vst [vmem:[#allocation2 + $0xc8] sm:$0xff] %v1060
    %1065 = vst [vmem:[#allocation2 + $0xd0] sm:$0xff] %v1059
    %1066 = vst [vmem:[#allocation2 + $0xd8] sm:$0xff] %v1058
    %1067 = vst [vmem:[#allocation2 + $0xe0] sm:$0xff] %v1057
    %1068 = vst [vmem:[#allocation2 + $0xe8] sm:$0xff] %v1062
    %1069 = vrot.lane.b32.xlu0 %v943, 111
    %v1070 = vpop.permute.xlu0 %1069
    %1071 = vrot.lane.b32.xlu0 %v944, 111
    %v1072 = vpop.permute.xlu0 %1071
    %1073 = vrot.lane.b32.xlu0 %v945, 111
    %v1074 = vpop.permute.xlu0 %1073
    %1075 = vrot.lane.b32.xlu0 %v946, 111
    %v1076 = vpop.permute.xlu0 %1075
    %1077 = vrot.lane.b32.xlu0 %v947, 111
    %v1078 = vpop.permute.xlu0 %1077
    %1079 = vrot.lane.b32.xlu0 %v948, 111
    %v1080 = vpop.permute.xlu0 %1079
    %v1081 = vsel %vm311, %v1078, %v1080
    %v1082 = vsel %vm311, %v1076, %v1078
    %v1083 = vsel %vm311, %v1074, %v1076
    %v1084 = vsel %vm311, %v1072, %v1074
    %v1085 = vsel %vm311, %v1070, %v1072
    %v1086 = vsel %vm311, %v1080, %v1070
    %1087 = vst [vmem:[#allocation2 + $0xf0] sm:$0xff] %v1085
    %1088 = vst [vmem:[#allocation2 + $0xf8] sm:$0xff] %v1084
    %1089 = vst [vmem:[#allocation2 + $0x100] sm:$0xff] %v1083
    %1090 = vst [vmem:[#allocation2 + $0x108] sm:$0xff] %v1082
    %1091 = vst [vmem:[#allocation2 + $0x110] sm:$0xff] %v1081
    %1092 = vst [vmem:[#allocation2 + $0x118] sm:$0xff] %v1086
    %1093 = vrot.lane.b32.xlu0 %v943, 110
    %v1094 = vpop.permute.xlu0 %1093
    %1095 = vrot.lane.b32.xlu0 %v944, 110
    %v1096 = vpop.permute.xlu0 %1095
    %1097 = vrot.lane.b32.xlu0 %v945, 110
    %v1098 = vpop.permute.xlu0 %1097
    %1099 = vrot.lane.b32.xlu0 %v946, 110
    %v1100 = vpop.permute.xlu0 %1099
    %1101 = vrot.lane.b32.xlu0 %v947, 110
    %v1102 = vpop.permute.xlu0 %1101
    %1103 = vrot.lane.b32.xlu0 %v948, 110
    %v1104 = vpop.permute.xlu0 %1103
    %v1105 = vsel %vm336, %v1102, %v1104
    %v1106 = vsel %vm336, %v1100, %v1102
    %v1107 = vsel %vm336, %v1098, %v1100
    %v1108 = vsel %vm336, %v1096, %v1098
    %v1109 = vsel %vm336, %v1094, %v1096
    %v1110 = vsel %vm336, %v1104, %v1094
    %1111 = vst [vmem:[#allocation2 + $0x120] sm:$0xff] %v1109
    %1112 = vst [vmem:[#allocation2 + $0x128] sm:$0xff] %v1108
    %1113 = vst [vmem:[#allocation2 + $0x130] sm:$0xff] %v1107
    %1114 = vst [vmem:[#allocation2 + $0x138] sm:$0xff] %v1106
    %1115 = vst [vmem:[#allocation2 + $0x140] sm:$0xff] %v1105
    %1116 = vst [vmem:[#allocation2 + $0x148] sm:$0xff] %v1110
    %1117 = vrot.lane.b32.xlu0 %v943, 109
    %v1118 = vpop.permute.xlu0 %1117
    %1119 = vrot.lane.b32.xlu0 %v944, 109
    %v1120 = vpop.permute.xlu0 %1119
    %1121 = vrot.lane.b32.xlu0 %v945, 109
    %v1122 = vpop.permute.xlu0 %1121
    %1123 = vrot.lane.b32.xlu0 %v946, 109
    %v1124 = vpop.permute.xlu0 %1123
    %1125 = vrot.lane.b32.xlu0 %v947, 109
    %v1126 = vpop.permute.xlu0 %1125
    %1127 = vrot.lane.b32.xlu0 %v948, 109
    %v1128 = vpop.permute.xlu0 %1127
    %v1129 = vsel %vm361, %v1126, %v1128
    %v1130 = vsel %vm361, %v1124, %v1126
    %v1131 = vsel %vm361, %v1122, %v1124
    %v1132 = vsel %vm361, %v1120, %v1122
    %v1133 = vsel %vm361, %v1118, %v1120
    %v1134 = vsel %vm361, %v1128, %v1118
    %1135 = vst [vmem:[#allocation2 + $0x150] sm:$0xff] %v1133
    %1136 = vst [vmem:[#allocation2 + $0x158] sm:$0xff] %v1132
    %1137 = vst [vmem:[#allocation2 + $0x160] sm:$0xff] %v1131
    %1138 = vst [vmem:[#allocation2 + $0x168] sm:$0xff] %v1130
    %1139 = vst [vmem:[#allocation2 + $0x170] sm:$0xff] %v1129
    %1140 = vst [vmem:[#allocation2 + $0x178] sm:$0xff] %v1134
    %v1141 = vld [vmem:[%s5] sm:$0xff]
    %v1142 = vld [vmem:[#allocation2] sm:$0xff]
    %v1143 = vld [vmem:[#allocation2 + $0x8] sm:$0xff]
    %v1144 = vld [vmem:[#allocation2 + $0x10] sm:$0xff]
    %v1145 = vld [vmem:[#allocation2 + $0x18] sm:$0xff]
    %v1146 = vld [vmem:[#allocation2 + $0x20] sm:$0xff]
    %v1147 = vld [vmem:[#allocation2 + $0x28] sm:$0xff]
    %v1148 = vld [vmem:[#allocation2 + $0x30] sm:$0xff]
    %v1149 = vld [vmem:[#allocation2 + $0x38] sm:$0xff]
    %v1150 = vld [vmem:[#allocation2 + $0x40] sm:$0xff]
    %v1151 = vld [vmem:[#allocation2 + $0x48] sm:$0xff]
    %v1152 = vld [vmem:[#allocation2 + $0x50] sm:$0xff]
    %v1153 = vld [vmem:[#allocation2 + $0x58] sm:$0xff]
    %v1154 = vld [vmem:[#allocation2 + $0x60] sm:$0xff]
    %v1155 = vld [vmem:[#allocation2 + $0x68] sm:$0xff]
    %v1156 = vld [vmem:[#allocation2 + $0x70] sm:$0xff]
    %v1157 = vld [vmem:[#allocation2 + $0x78] sm:$0xff]
    %v1158 = vld [vmem:[#allocation2 + $0x80] sm:$0xff]
    %v1159 = vld [vmem:[#allocation2 + $0x88] sm:$0xff]
    %v1160 = vld [vmem:[#allocation2 + $0x90] sm:$0xff]
    %v1161 = vld [vmem:[#allocation2 + $0x98] sm:$0xff]
    %v1162 = vld [vmem:[#allocation2 + $0xa0] sm:$0xff]
    %v1163 = vld [vmem:[#allocation2 + $0xa8] sm:$0xff]
    %v1164 = vld [vmem:[#allocation2 + $0xb0] sm:$0xff]
    %v1165 = vld [vmem:[#allocation2 + $0xb8] sm:$0xff]
    %v1166 = vld [vmem:[#allocation2 + $0xc0] sm:$0xff]
    %v1167 = vld [vmem:[#allocation2 + $0xc8] sm:$0xff]
    %v1168 = vld [vmem:[#allocation2 + $0xd0] sm:$0xff]
    %v1169 = vld [vmem:[#allocation2 + $0xd8] sm:$0xff]
    %v1170 = vld [vmem:[#allocation2 + $0xe0] sm:$0xff]
    %v1171 = vld [vmem:[#allocation2 + $0xe8] sm:$0xff]
    %v1172 = vld [vmem:[#allocation2 + $0xf0] sm:$0xff]
    %v1173 = vld [vmem:[#allocation2 + $0xf8] sm:$0xff]
    %v1174 = vld [vmem:[#allocation2 + $0x100] sm:$0xff]
    %v1175 = vld [vmem:[#allocation2 + $0x108] sm:$0xff]
    %v1176 = vld [vmem:[#allocation2 + $0x110] sm:$0xff]
    %v1177 = vld [vmem:[#allocation2 + $0x118] sm:$0xff]
    %v1178 = vld [vmem:[#allocation2 + $0x120] sm:$0xff]
    %v1179 = vld [vmem:[#allocation2 + $0x128] sm:$0xff]
    %v1180 = vld [vmem:[#allocation2 + $0x130] sm:$0xff]
    %v1181 = vld [vmem:[#allocation2 + $0x138] sm:$0xff]
    %v1182 = vld [vmem:[#allocation2 + $0x140] sm:$0xff]
    %v1183 = vld [vmem:[#allocation2 + $0x148] sm:$0xff]
    %v1184 = vld [vmem:[#allocation2 + $0x150] sm:$0xff]
    %v1185 = vld [vmem:[#allocation2 + $0x158] sm:$0xff]
    %v1186 = vld [vmem:[#allocation2 + $0x160] sm:$0xff]
    %v1187 = vld [vmem:[#allocation2 + $0x168] sm:$0xff]
    %v1188 = vld [vmem:[#allocation2 + $0x170] sm:$0xff]
    %v1189 = vld [vmem:[#allocation2 + $0x178] sm:$0xff]
    %v1190 = vld [vmem:[%s6] sm:$0xff]
    %v1192 = vsel %vm424, %v1190, 0
    %1194 = vmatprep.subr.mxu0 %v944
    %1195 = vmatpush1.msra.mxu0 %v943
    %1196 = vmatprep.subr.mxu0 0.0
    %1197 = vmatpush1.msra.mxu0 0.0
    %1198 = vmatprep.subr.mxu0 0.0
    %1199 = vmatpush1.msra.mxu0 0.0
    %1200 = vmatprep.subr.mxu0 0.0
    %1201 = vmatpush1.msra.mxu0 0.0
    %1202 = vmatprep.subr.mxu0 0.0
    %1203 = vmatpush1.msra.mxu0 0.0
    %1204 = vmatprep.subr.mxu0 0.0
    %1205 = vmatpush1.msra.mxu0 0.0
    %1206 = vmatprep.subr.mxu0 0.0
    %1207 = vmatpush1.msra.mxu0 0.0
    %1208 = vmatprep.subr.mxu0 0.0
    %1209 = vmatpush1.msra.mxu0 0.0
    %1210 = vmatprep.subr.mxu0 0.0
    %1211 = vmatpush1.msra.mxu0 0.0
    %1212 = vmatprep.subr.mxu0 0.0
    %1213 = vmatpush1.msra.mxu0 0.0
    %1214 = vmatprep.subr.mxu0 0.0
    %1215 = vmatpush1.msra.mxu0 0.0
    %1216 = vmatprep.subr.mxu0 0.0
    %1217 = vmatpush1.msra.mxu0 0.0
    %1218 = vmatprep.subr.mxu0 0.0
    %1219 = vmatpush1.msra.mxu0 0.0
    %1220 = vmatprep.subr.mxu0 0.0
    %1221 = vmatpush1.msra.mxu0 0.0
    %1222 = vmatprep.subr.mxu0 0.0
    %1223 = vmatpush1.msra.mxu0 0.0
    %1224 = vmatprep.subr.mxu0 0.0
    %1225 = vmatpush1.msra.mxu0 0.0
    %1226 = vmatprep.subr.mxu0 0.0
    %1227 = vmatpush1.msra.mxu0 0.0
    %1228 = vmatprep.subr.mxu0 0.0
    %1229 = vmatpush1.msra.mxu0 0.0
    %1230 = vmatprep.subr.mxu0 0.0
    %1231 = vmatpush1.msra.mxu0 0.0
    %1232 = vmatprep.subr.mxu0 0.0
    %1233 = vmatpush1.msra.mxu0 0.0
    %1234 = vmatprep.subr.mxu0 0.0
    %1235 = vmatpush1.msra.mxu0 0.0
    %1236 = vmatprep.subr.mxu0 0.0
    %1237 = vmatpush1.msra.mxu0 0.0
    %1238 = vmatprep.subr.mxu0 0.0
    %1239 = vmatpush1.msra.mxu0 0.0
    %1240 = vmatprep.subr.mxu0 0.0
    %1241 = vmatpush1.msra.mxu0 0.0
    %1242 = vmatprep.subr.mxu0 0.0
    %1243 = vmatpush1.msra.mxu0 0.0
    %1244 = vmatprep.subr.mxu0 0.0
    %1245 = vmatpush1.msra.mxu0 0.0
    %1246 = vmatprep.subr.mxu0 0.0
    %1247 = vmatpush1.msra.mxu0 0.0
    %1248 = vmatprep.subr.mxu0 0.0
    %1249 = vmatpush1.msra.mxu0 0.0
    %1250 = vmatprep.subr.mxu0 0.0
    %1251 = vmatpush1.msra.mxu0 0.0
    %1252 = vmatprep.subr.mxu0 0.0
    %1253 = vmatpush1.msra.mxu0 0.0
    %1254 = vmatprep.subr.mxu0 0.0
    %1255 = vmatpush1.msra.mxu0 0.0
    %1256 = vmatprep.subr.mxu0 0.0
    %1257 = vmatpush1.msra.mxu0 0.0
    %1258 = vmatprep.mubr.f32.mxu0 0.0
    %1259 = vmatmul.mubr.f32.gmra.mrb[0].mxu0 %v1192
    %v1260 = vpop.f32.mrb[0].mxu0
    %v1261 = vadd.f32 0.0, %v1260
    %v1262 = vpop.f32.mrb[0].mxu0
    %v1263 = vadd.f32 0.0, %v1262
    %1264 = vdwg.mxu0
    %1265 = vmatprep.subr.mxu0 %v946
    %1266 = vmatpush1.msra.mxu0 %v945
    %1267 = vmatprep.subr.mxu0 0.0
    %1268 = vmatpush1.msra.mxu0 0.0
    %1269 = vmatprep.subr.mxu0 0.0
    %1270 = vmatpush1.msra.mxu0 0.0
    %1271 = vmatprep.subr.mxu0 0.0
    %1272 = vmatpush1.msra.mxu0 0.0
    %1273 = vmatprep.subr.mxu0 0.0
    %1274 = vmatpush1.msra.mxu0 0.0
    %1275 = vmatprep.subr.mxu0 0.0
    %1276 = vmatpush1.msra.mxu0 0.0
    %1277 = vmatprep.subr.mxu0 0.0
    %1278 = vmatpush1.msra.mxu0 0.0
    %1279 = vmatprep.subr.mxu0 0.0
    %1280 = vmatpush1.msra.mxu0 0.0
    %1281 = vmatprep.subr.mxu0 0.0
    %1282 = vmatpush1.msra.mxu0 0.0
    %1283 = vmatprep.subr.mxu0 0.0
    %1284 = vmatpush1.msra.mxu0 0.0
    %1285 = vmatprep.subr.mxu0 0.0
    %1286 = vmatpush1.msra.mxu0 0.0
    %1287 = vmatprep.subr.mxu0 0.0
    %1288 = vmatpush1.msra.mxu0 0.0
    %1289 = vmatprep.subr.mxu0 0.0
    %1290 = vmatpush1.msra.mxu0 0.0
    %1291 = vmatprep.subr.mxu0 0.0
    %1292 = vmatpush1.msra.mxu0 0.0
    %1293 = vmatprep.subr.mxu0 0.0
    %1294 = vmatpush1.msra.mxu0 0.0
    %1295 = vmatprep.subr.mxu0 0.0
    %1296 = vmatpush1.msra.mxu0 0.0
    %1297 = vmatprep.subr.mxu0 0.0
    %1298 = vmatpush1.msra.mxu0 0.0
    %1299 = vmatprep.subr.mxu0 0.0
    %1300 = vmatpush1.msra.mxu0 0.0
    %1301 = vmatprep.subr.mxu0 0.0
    %1302 = vmatpush1.msra.mxu0 0.0
    %1303 = vmatprep.subr.mxu0 0.0
    %1304 = vmatpush1.msra.mxu0 0.0
    %1305 = vmatprep.subr.mxu0 0.0
    %1306 = vmatpush1.msra.mxu0 0.0
    %1307 = vmatprep.subr.mxu0 0.0
    %1308 = vmatpush1.msra.mxu0 0.0
    %1309 = vmatprep.subr.mxu0 0.0
    %1310 = vmatpush1.msra.mxu0 0.0
    %1311 = vmatprep.subr.mxu0 0.0
    %1312 = vmatpush1.msra.mxu0 0.0
    %1313 = vmatprep.subr.mxu0 0.0
    %1314 = vmatpush1.msra.mxu0 0.0
    %1315 = vmatprep.subr.mxu0 0.0
    %1316 = vmatpush1.msra.mxu0 0.0
    %1317 = vmatprep.subr.mxu0 0.0
    %1318 = vmatpush1.msra.mxu0 0.0
    %1319 = vmatprep.subr.mxu0 0.0
    %1320 = vmatpush1.msra.mxu0 0.0
    %1321 = vmatprep.subr.mxu0 0.0
    %1322 = vmatpush1.msra.mxu0 0.0
    %1323 = vmatprep.subr.mxu0 0.0
    %1324 = vmatpush1.msra.mxu0 0.0
    %1325 = vmatprep.subr.mxu0 0.0
    %1326 = vmatpush1.msra.mxu0 0.0
    %1327 = vmatprep.subr.mxu0 0.0
    %1328 = vmatpush1.msra.mxu0 0.0
    %1329 = vmatprep.mubr.f32.mxu0 0.0
    %1330 = vmatmul.mubr.f32.gmra.mrb[0].mxu0 %v1192
    %v1331 = vpop.f32.mrb[0].mxu0
    %v1332 = vadd.f32 0.0, %v1331
    %v1333 = vpop.f32.mrb[0].mxu0
    %v1334 = vadd.f32 0.0, %v1333
    %1335 = vdwg.mxu0
    %1336 = vmatprep.subr.mxu0 %v948
    %1337 = vmatpush1.msra.mxu0 %v947
    %1338 = vmatprep.subr.mxu0 0.0
    %1339 = vmatpush1.msra.mxu0 0.0
    %1340 = vmatprep.subr.mxu0 0.0
    %1341 = vmatpush1.msra.mxu0 0.0
    %1342 = vmatprep.subr.mxu0 0.0
    %1343 = vmatpush1.msra.mxu0 0.0
    %1344 = vmatprep.subr.mxu0 0.0
    %1345 = vmatpush1.msra.mxu0 0.0
    %1346 = vmatprep.subr.mxu0 0.0
    %1347 = vmatpush1.msra.mxu0 0.0
    %1348 = vmatprep.subr.mxu0 0.0
    %1349 = vmatpush1.msra.mxu0 0.0
    %1350 = vmatprep.subr.mxu0 0.0
    %1351 = vmatpush1.msra.mxu0 0.0
    %1352 = vmatprep.subr.mxu0 0.0
    %1353 = vmatpush1.msra.mxu0 0.0
    %1354 = vmatprep.subr.mxu0 0.0
    %1355 = vmatpush1.msra.mxu0 0.0
    %1356 = vmatprep.subr.mxu0 0.0
    %1357 = vmatpush1.msra.mxu0 0.0
    %1358 = vmatprep.subr.mxu0 0.0
    %1359 = vmatpush1.msra.mxu0 0.0
    %1360 = vmatprep.subr.mxu0 0.0
    %1361 = vmatpush1.msra.mxu0 0.0
    %1362 = vmatprep.subr.mxu0 0.0
    %1363 = vmatpush1.msra.mxu0 0.0
    %1364 = vmatprep.subr.mxu0 0.0
    %1365 = vmatpush1.msra.mxu0 0.0
    %1366 = vmatprep.subr.mxu0 0.0
    %1367 = vmatpush1.msra.mxu0 0.0
    %1368 = vmatprep.subr.mxu0 0.0
    %1369 = vmatpush1.msra.mxu0 0.0
    %1370 = vmatprep.subr.mxu0 0.0
    %1371 = vmatpush1.msra.mxu0 0.0
    %1372 = vmatprep.subr.mxu0 0.0
    %1373 = vmatpush1.msra.mxu0 0.0
    %1374 = vmatprep.subr.mxu0 0.0
    %1375 = vmatpush1.msra.mxu0 0.0
    %1376 = vmatprep.subr.mxu0 0.0
    %1377 = vmatpush1.msra.mxu0 0.0
    %1378 = vmatprep.subr.mxu0 0.0
    %1379 = vmatpush1.msra.mxu0 0.0
    %1380 = vmatprep.subr.mxu0 0.0
    %1381 = vmatpush1.msra.mxu0 0.0
    %1382 = vmatprep.subr.mxu0 0.0
    %1383 = vmatpush1.msra.mxu0 0.0
    %1384 = vmatprep.subr.mxu0 0.0
    %1385 = vmatpush1.msra.mxu0 0.0
    %1386 = vmatprep.subr.mxu0 0.0
    %1387 = vmatpush1.msra.mxu0 0.0
    %1388 = vmatprep.subr.mxu0 0.0
    %1389 = vmatpush1.msra.mxu0 0.0
    %1390 = vmatprep.subr.mxu0 0.0
    %1391 = vmatpush1.msra.mxu0 0.0
    %1392 = vmatprep.subr.mxu0 0.0
    %1393 = vmatpush1.msra.mxu0 0.0
    %1394 = vmatprep.subr.mxu0 0.0
    %1395 = vmatpush1.msra.mxu0 0.0
    %1396 = vmatprep.subr.mxu0 0.0
    %1397 = vmatpush1.msra.mxu0 0.0
    %1398 = vmatprep.subr.mxu0 0.0
    %1399 = vmatpush1.msra.mxu0 0.0
    %1400 = vmatprep.mubr.f32.mxu0 0.0
    %1401 = vmatmul.mubr.f32.gmra.mrb[0].mxu0 %v1192
    %v1402 = vpop.f32.mrb[0].mxu0
    %v1403 = vadd.f32 0.0, %v1402
    %v1404 = vpop.f32.mrb[0].mxu0
    %v1405 = vadd.f32 0.0, %v1404
    %1406 = vdwg.mxu0
    %v1408 = vsel %vm641, %v1141, 0
    %1410 = vmatprep.subr.mxu0 %v1143
    %1411 = vmatpush1.msra.mxu0 %v1142
    %1412 = vmatprep.subr.mxu0 %v1149
    %1413 = vmatpush1.msra.mxu0 %v1148
    %1414 = vmatprep.subr.mxu0 %v1155
    %1415 = vmatpush1.msra.mxu0 %v1154
    %1416 = vmatprep.subr.mxu0 %v1161
    %1417 = vmatpush1.msra.mxu0 %v1160
    %1418 = vmatprep.subr.mxu0 %v1167
    %1419 = vmatpush1.msra.mxu0 %v1166
    %1420 = vmatprep.subr.mxu0 %v1173
    %1421 = vmatpush1.msra.mxu0 %v1172
    %1422 = vmatprep.subr.mxu0 %v1179
    %1423 = vmatpush1.msra.mxu0 %v1178
    %1424 = vmatprep.subr.mxu0 %v1185
    %1425 = vmatpush1.msra.mxu0 %v1184
    %1426 = vmatprep.subr.mxu0 0.0
    %1427 = vmatpush1.msra.mxu0 0.0
    %1428 = vmatprep.subr.mxu0 0.0
    %1429 = vmatpush1.msra.mxu0 0.0
    %1430 = vmatprep.subr.mxu0 0.0
    %1431 = vmatpush1.msra.mxu0 0.0
    %1432 = vmatprep.subr.mxu0 0.0
    %1433 = vmatpush1.msra.mxu0 0.0
    %1434 = vmatprep.subr.mxu0 0.0
    %1435 = vmatpush1.msra.mxu0 0.0
    %1436 = vmatprep.subr.mxu0 0.0
    %1437 = vmatpush1.msra.mxu0 0.0
    %1438 = vmatprep.subr.mxu0 0.0
    %1439 = vmatpush1.msra.mxu0 0.0
    %1440 = vmatprep.subr.mxu0 0.0
    %1441 = vmatpush1.msra.mxu0 0.0
    %1442 = vmatprep.subr.mxu0 0.0
    %1443 = vmatpush1.msra.mxu0 0.0
    %1444 = vmatprep.subr.mxu0 0.0
    %1445 = vmatpush1.msra.mxu0 0.0
    %1446 = vmatprep.subr.mxu0 0.0
    %1447 = vmatpush1.msra.mxu0 0.0
    %1448 = vmatprep.subr.mxu0 0.0
    %1449 = vmatpush1.msra.mxu0 0.0
    %1450 = vmatprep.subr.mxu0 0.0
    %1451 = vmatpush1.msra.mxu0 0.0
    %1452 = vmatprep.subr.mxu0 0.0
    %1453 = vmatpush1.msra.mxu0 0.0
    %1454 = vmatprep.subr.mxu0 0.0
    %1455 = vmatpush1.msra.mxu0 0.0
    %1456 = vmatprep.subr.mxu0 0.0
    %1457 = vmatpush1.msra.mxu0 0.0
    %1458 = vmatprep.subr.mxu0 0.0
    %1459 = vmatpush1.msra.mxu0 0.0
    %1460 = vmatprep.subr.mxu0 0.0
    %1461 = vmatpush1.msra.mxu0 0.0
    %1462 = vmatprep.subr.mxu0 0.0
    %1463 = vmatpush1.msra.mxu0 0.0
    %1464 = vmatprep.subr.mxu0 0.0
    %1465 = vmatpush1.msra.mxu0 0.0
    %1466 = vmatprep.subr.mxu0 0.0
    %1467 = vmatpush1.msra.mxu0 0.0
    %1468 = vmatprep.subr.mxu0 0.0
    %1469 = vmatpush1.msra.mxu0 0.0
    %1470 = vmatprep.subr.mxu0 0.0
    %1471 = vmatpush1.msra.mxu0 0.0
    %1472 = vmatprep.subr.mxu0 0.0
    %1473 = vmatpush1.msra.mxu0 0.0
    %1474 = vmatprep.mubr.f32.mxu0 0.0
    %1475 = vmatmul.mubr.f32.gmra.mrb[0].mxu0 %v1408
    %v1476 = vpop.f32.mrb[0].mxu0
    %v1477 = vadd.f32 %v1261, %v1476
    %v1478 = vpop.f32.mrb[0].mxu0
    %v1479 = vadd.f32 %v1263, %v1478
    %1480 = vdwg.mxu0
    %1481 = vmatprep.subr.mxu0 %v1145
    %1482 = vmatpush1.msra.mxu0 %v1144
    %1483 = vmatprep.subr.mxu0 %v1151
    %1484 = vmatpush1.msra.mxu0 %v1150
    %1485 = vmatprep.subr.mxu0 %v1157
    %1486 = vmatpush1.msra.mxu0 %v1156
    %1487 = vmatprep.subr.mxu0 %v1163
    %1488 = vmatpush1.msra.mxu0 %v1162
    %1489 = vmatprep.subr.mxu0 %v1169
    %1490 = vmatpush1.msra.mxu0 %v1168
    %1491 = vmatprep.subr.mxu0 %v1175
    %1492 = vmatpush1.msra.mxu0 %v1174
    %1493 = vmatprep.subr.mxu0 %v1181
    %1494 = vmatpush1.msra.mxu0 %v1180
    %1495 = vmatprep.subr.mxu0 %v1187
    %1496 = vmatpush1.msra.mxu0 %v1186
    %1497 = vmatprep.subr.mxu0 0.0
    %1498 = vmatpush1.msra.mxu0 0.0
    %1499 = vmatprep.subr.mxu0 0.0
    %1500 = vmatpush1.msra.mxu0 0.0
    %1501 = vmatprep.subr.mxu0 0.0
    %1502 = vmatpush1.msra.mxu0 0.0
    %1503 = vmatprep.subr.mxu0 0.0
    %1504 = vmatpush1.msra.mxu0 0.0
    %1505 = vmatprep.subr.mxu0 0.0
    %1506 = vmatpush1.msra.mxu0 0.0
    %1507 = vmatprep.subr.mxu0 0.0
    %1508 = vmatpush1.msra.mxu0 0.0
    %1509 = vmatprep.subr.mxu0 0.0
    %1510 = vmatpush1.msra.mxu0 0.0
    %1511 = vmatprep.subr.mxu0 0.0
    %1512 = vmatpush1.msra.mxu0 0.0
    %1513 = vmatprep.subr.mxu0 0.0
    %1514 = vmatpush1.msra.mxu0 0.0
    %1515 = vmatprep.subr.mxu0 0.0
    %1516 = vmatpush1.msra.mxu0 0.0
    %1517 = vmatprep.subr.mxu0 0.0
    %1518 = vmatpush1.msra.mxu0 0.0
    %1519 = vmatprep.subr.mxu0 0.0
    %1520 = vmatpush1.msra.mxu0 0.0
    %1521 = vmatprep.subr.mxu0 0.0
    %1522 = vmatpush1.msra.mxu0 0.0
    %1523 = vmatprep.subr.mxu0 0.0
    %1524 = vmatpush1.msra.mxu0 0.0
    %1525 = vmatprep.subr.mxu0 0.0
    %1526 = vmatpush1.msra.mxu0 0.0
    %1527 = vmatprep.subr.mxu0 0.0
    %1528 = vmatpush1.msra.mxu0 0.0
    %1529 = vmatprep.subr.mxu0 0.0
    %1530 = vmatpush1.msra.mxu0 0.0
    %1531 = vmatprep.subr.mxu0 0.0
    %1532 = vmatpush1.msra.mxu0 0.0
    %1533 = vmatprep.subr.mxu0 0.0
    %1534 = vmatpush1.msra.mxu0 0.0
    %1535 = vmatprep.subr.mxu0 0.0
    %1536 = vmatpush1.msra.mxu0 0.0
    %1537 = vmatprep.subr.mxu0 0.0
    %1538 = vmatpush1.msra.mxu0 0.0
    %1539 = vmatprep.subr.mxu0 0.0
    %1540 = vmatpush1.msra.mxu0 0.0
    %1541 = vmatprep.subr.mxu0 0.0
    %1542 = vmatpush1.msra.mxu0 0.0
    %1543 = vmatprep.subr.mxu0 0.0
    %1544 = vmatpush1.msra.mxu0 0.0
    %1545 = vmatprep.mubr.f32.mxu0 0.0
    %1546 = vmatmul.mubr.f32.gmra.mrb[0].mxu0 %v1408
    %v1547 = vpop.f32.mrb[0].mxu0
    %v1548 = vadd.f32 %v1332, %v1547
    %v1549 = vpop.f32.mrb[0].mxu0
    %v1550 = vadd.f32 %v1334, %v1549
    %1551 = vdwg.mxu0
    %1552 = vmatprep.subr.mxu0 %v1147
    %1553 = vmatpush1.msra.mxu0 %v1146
    %1554 = vmatprep.subr.mxu0 %v1153
    %1555 = vmatpush1.msra.mxu0 %v1152
    %1556 = vmatprep.subr.mxu0 %v1159
    %1557 = vmatpush1.msra.mxu0 %v1158
    %1558 = vmatprep.subr.mxu0 %v1165
    %1559 = vmatpush1.msra.mxu0 %v1164
    %1560 = vmatprep.subr.mxu0 %v1171
    %1561 = vmatpush1.msra.mxu0 %v1170
    %1562 = vmatprep.subr.mxu0 %v1177
    %1563 = vmatpush1.msra.mxu0 %v1176
    %1564 = vmatprep.subr.mxu0 %v1183
    %1565 = vmatpush1.msra.mxu0 %v1182
    %1566 = vmatprep.subr.mxu0 %v1189
    %1567 = vmatpush1.msra.mxu0 %v1188
    %1568 = vmatprep.subr.mxu0 0.0
    %1569 = vmatpush1.msra.mxu0 0.0
    %1570 = vmatprep.subr.mxu0 0.0
    %1571 = vmatpush1.msra.mxu0 0.0
    %1572 = vmatprep.subr.mxu0 0.0
    %1573 = vmatpush1.msra.mxu0 0.0
    %1574 = vmatprep.subr.mxu0 0.0
    %1575 = vmatpush1.msra.mxu0 0.0
    %1576 = vmatprep.subr.mxu0 0.0
    %1577 = vmatpush1.msra.mxu0 0.0
    %1578 = vmatprep.subr.mxu0 0.0
    %1579 = vmatpush1.msra.mxu0 0.0
    %1580 = vmatprep.subr.mxu0 0.0
    %1581 = vmatpush1.msra.mxu0 0.0
    %1582 = vmatprep.subr.mxu0 0.0
    %1583 = vmatpush1.msra.mxu0 0.0
    %1584 = vmatprep.subr.mxu0 0.0
    %1585 = vmatpush1.msra.mxu0 0.0
    %1586 = vmatprep.subr.mxu0 0.0
    %1587 = vmatpush1.msra.mxu0 0.0
    %1588 = vmatprep.subr.mxu0 0.0
    %1589 = vmatpush1.msra.mxu0 0.0
    %1590 = vmatprep.subr.mxu0 0.0
    %1591 = vmatpush1.msra.mxu0 0.0
    %1592 = vmatprep.subr.mxu0 0.0
    %1593 = vmatpush1.msra.mxu0 0.0
    %1594 = vmatprep.subr.mxu0 0.0
    %1595 = vmatpush1.msra.mxu0 0.0
    %1596 = vmatprep.subr.mxu0 0.0
    %1597 = vmatpush1.msra.mxu0 0.0
    %1598 = vmatprep.subr.mxu0 0.0
    %1599 = vmatpush1.msra.mxu0 0.0
    %1600 = vmatprep.subr.mxu0 0.0
    %1601 = vmatpush1.msra.mxu0 0.0
    %1602 = vmatprep.subr.mxu0 0.0
    %1603 = vmatpush1.msra.mxu0 0.0
    %1604 = vmatprep.subr.mxu0 0.0
    %1605 = vmatpush1.msra.mxu0 0.0
    %1606 = vmatprep.subr.mxu0 0.0
    %1607 = vmatpush1.msra.mxu0 0.0
    %1608 = vmatprep.subr.mxu0 0.0
    %1609 = vmatpush1.msra.mxu0 0.0
    %1610 = vmatprep.subr.mxu0 0.0
    %1611 = vmatpush1.msra.mxu0 0.0
    %1612 = vmatprep.subr.mxu0 0.0
    %1613 = vmatpush1.msra.mxu0 0.0
    %1614 = vmatprep.subr.mxu0 0.0
    %1615 = vmatpush1.msra.mxu0 0.0
    %1616 = vmatprep.mubr.f32.mxu0 0.0
    %1617 = vmatmul.mubr.f32.gmra.mrb[0].mxu0 %v1408
    %v1618 = vpop.f32.mrb[0].mxu0
    %v1619 = vadd.f32 %v1403, %v1618
    %v1620 = vpop.f32.mrb[0].mxu0
    %v1621 = vadd.f32 %v1405, %v1620
    %1622 = vdwg.mxu0
    %v1623 = vmul.f32 %v1477, %v168
    %v1624 = vmul.f32 %v1479, %v169
    %v1625 = vmul.f32 %v1548, %v170
    %v1626 = vmul.f32 %v1550, %v171
    %v1627 = vmul.f32 %v1619, %v172
    %v1628 = vmul.f32 %v1621, %v173
    %v1629 = vadd.f32 %v1623, %v1624
    %v1630 = vadd.f32 %v1629, %v1625
    %v1631 = vadd.f32 %v1630, %v1626
    %v1632 = vadd.f32 %v1631, %v1627
    %v1633 = vadd.f32 %v1632, %v1628
    %1634 = vadd.xlane.f32.xlu0 %v1633
    %v1635 = vpop.xlane.xlu0 %1634
    %v1636 = vmul.f32 %v1635, 0.001953125
    %v1637 = vsub.f32 %v1477, %v1636
    %v1638 = vsub.f32 %v1479, %v1636
    %v1639 = vsub.f32 %v1548, %v1636
    %v1640 = vsub.f32 %v1550, %v1636
    %v1641 = vsub.f32 %v1619, %v1636
    %v1642 = vsub.f32 %v1621, %v1636
    %v1643 = vmul.f32 %v1637, %v168
    %v1644 = vmul.f32 %v1638, %v169
    %v1645 = vmul.f32 %v1639, %v170
    %v1646 = vmul.f32 %v1640, %v171
    %v1647 = vmul.f32 %v1641, %v172
    %v1648 = vmul.f32 %v1642, %v173
    %v1649 = vmul.f32 %v1643, %v1643
    %v1650 = vmul.f32 %v1644, %v1644
    %v1651 = vmul.f32 %v1645, %v1645
    %v1652 = vmul.f32 %v1646, %v1646
    %v1653 = vmul.f32 %v1647, %v1647
    %v1654 = vmul.f32 %v1648, %v1648
    %v1655 = vadd.f32 %v1649, %v1650
    %v1656 = vadd.f32 %v1655, %v1651
    %v1657 = vadd.f32 %v1656, %v1652
    %v1658 = vadd.f32 %v1657, %v1653
    %v1659 = vadd.f32 %v1658, %v1654
    %1660 = vadd.xlane.f32.xlu0 %v1659
    %v1661 = vpop.xlane.xlu0 %1660
    %v1662 = vmul.f32 %v1661, 0.001953125
    %v1663 = vadd.f32 %v1662, 1e-05
    %v1664 = vrsqrt.pop %v1663
    %v1665 = vld [vmem:[%s7] sm:$0xff]
    %v1666 = vmul.f32 %v1664, %v1665
    %1668 = vset.pattern.permute.xlu0 0
    %1669 = vperm.xlu0 %1668, %v1666
    %v1670 = vpop.permute.xlu0 %1669
    %v1672 = vmul.f32 %v1643, %v1670
    %v1673 = vmul.f32 %v1644, %v1670
    %v1674 = vmul.f32 %v1645, %v1670
    %v1675 = vmul.f32 %v1646, %v1670
    %v1676 = vmul.f32 %v1647, %v1670
    %v1677 = vmul.f32 %v1648, %v1670
    %v1678 = vld [vmem:[%s8] sm:$0xff]
    %1680 = vset.pattern.permute.xlu0 0
    %1681 = vperm.xlu0 %1680, %v1678
    %v1682 = vpop.permute.xlu0 %1681
    %v1684 = vadd.f32 %v1672, %v1682
    %v1685 = vadd.f32 %v1673, %v1682
    %v1686 = vadd.f32 %v1674, %v1682
    %v1687 = vadd.f32 %v1675, %v1682
    %v1688 = vadd.f32 %v1676, %v1682
    %v1689 = vadd.f32 %v1677, %v1682
    %v1690 = vadd.f32 %v1684, %v45
    %v1691 = vadd.f32 %v1685, %v46
    %v1692 = vadd.f32 %v1686, %v47
    %v1693 = vadd.f32 %v1687, %v48
    %v1694 = vadd.f32 %v1688, %v49
    %v1695 = vadd.f32 %v1689, %v50
    %vm1696 = vcmp.ge.f32.partialorder %v1690, 0.0
    %vm1697 = vcmp.ge.f32.partialorder %v1691, 0.0
    %vm1698 = vcmp.ge.f32.partialorder %v1692, 0.0
    %vm1699 = vcmp.ge.f32.partialorder %v1693, 0.0
    %vm1700 = vcmp.ge.f32.partialorder %v1694, 0.0
    %vm1701 = vcmp.ge.f32.partialorder %v1695, 0.0
    %v1702 = vmul.f32 %v1690, 0.1
    %v1703 = vmul.f32 %v1691, 0.1
    %v1704 = vmul.f32 %v1692, 0.1
    %v1705 = vmul.f32 %v1693, 0.1
    %v1706 = vmul.f32 %v1694, 0.1
    %v1707 = vmul.f32 %v1695, 0.1
    %v1708 = vsel %vm1696, %v1690, %v1702
    %v1709 = vsel %vm1697, %v1691, %v1703
    %v1710 = vsel %vm1698, %v1692, %v1704
    %v1711 = vsel %vm1699, %v1693, %v1705
    %v1712 = vsel %vm1700, %v1694, %v1706
    %v1713 = vsel %vm1701, %v1695, %v1707
    %1714 = vst [vmem:[#allocation6] sm:$0xff] %v1708
    %1715 = vst [vmem:[#allocation6 + $0x8] sm:$0xff] %v1709
    %1716 = vst [vmem:[#allocation6 + $0x10] sm:$0xff] %v1710
    %1717 = vst [vmem:[#allocation6 + $0x18] sm:$0xff] %v1711
    %1718 = vst [vmem:[#allocation6 + $0x20] sm:$0xff] %v1712
    %1719 = vst [vmem:[#allocation6 + $0x28] sm:$0xff] %v1713
    // Predicated region
    $region42: #{tpu_custom_call.1} parent=1 // pred_check
      _
    $region43: #{tpu_custom_call.1} parent=1 // pred_check_branch
      %1721 = sbr.rel (0) target = $region45
    $region44: #{tpu_custom_call.1} parent=1 // pred_region
      %s1723 = ssub.s32 768, 768
      %1724 = vsyncadd [#allocation5], %s1723
      %s1726 = sshll.u32 [#allocation6], 4
      %s1727 = int_to_ptr.vmem [resolvable:$true] %s1726
      %1729 = dma.vmem_to_hbm [thread:$0]  %s1727, 768, %s9, [#allocation5]
    $region45: #{tpu_custom_call.1} parent=1 // pred_fallthru
      _
    // Predicated region
    $region46: #{tpu_custom_call.1} parent=1 // pred_check
      _
    $region47: #{tpu_custom_call.1} parent=1 // pred_check_branch
      %1731 = sbr.rel (0) target = $region49
    $region48: #{tpu_custom_call.1} parent=1 // pred_region
      %1732 = dma.done [#allocation5], 768
    $region49: #{tpu_custom_call.1} parent=1 // pred_fallthru
      _
    %1733 = vsyncpa [#allocation4], 1
    %1734 = vsyncpa [#allocation5], 1

</llo_original>
